<compile_context>
chip_gen: v7x
topology: tpu7x:2x2x1
jax: 0.10.0
libtpu: 0.0.40
codegen_flags: <defaults>
</compile_context>

<pallas_src>
from functools import partial

import jax
import jax.numpy as jnp
from jax import lax
from jax.experimental import pallas as pl
from jax.experimental.pallas import tpu as pltpu

# ---------------- config ----------------
B = 8          # batch size
T = 8          # max trajectory length
DIN = 16       # raw transition feature dim (LinearEmbedder input_dim)
E_TRANS = 32   # transition_embedder.embed_dim
H = 128        # LSTM hidden size (hard-coded in TrajectoryEmbedder)
EMBED = 32     # TrajectoryEmbedder embed_dim
VOCAB = 10     # id_embedder (FixedVocabEmbedder) vocab size
G = 4 * H      # LSTM gate width
EOUT_PAD = 128 # lane-padded output width (EMBED padded to full 128-lane stores)


# ---------------- fused Pallas kernel ----------------
def _traj_fused_kernel(x_ref, len_ref, w_in_ref, whh_ref, b_in_ref,
                       fc_w_ref, fc_b_ref, out_w_ref, out_b_ref,
                       allctx_ref, tctx_ref):
    # x_ref: (B, T, DIN) batch-major raw transition features.
    # Outputs:
    #   allctx_ref: ((T+1)*B, EOUT_PAD), rows time-major (row = s*B + b)
    #   tctx_ref:   (B, EOUT_PAD), context at the last unpadded step per trajectory.

    # ---- 1. folded transition-embedder + LSTM input projection, ONE matmul ----
    # Reorder batch-major input into time-major rows (row = t*B + b) with cheap
    # static ref slices so every later per-step slice is contiguous & tile-aligned.
    x_tm = jnp.concatenate([x_ref[:, t, :] for t in range(T)], axis=0)       # (T*B, DIN)
    xg = jnp.dot(x_tm, w_in_ref[...],
                 preferred_element_type=jnp.float32) + b_in_ref[...]         # (T*B, 4H)

    lengths = len_ref[...]                                                   # (B, 1) int32
    t_iota = lax.broadcasted_iota(jnp.int32, (B, T), 1)
    valid = t_iota < lengths                                                 # (B, T) bool

    whh = whh_ref[...]                                                       # (H, 4H)
    zeros_bh = jnp.zeros((B, H), jnp.float32)
    h = zeros_bh
    c = zeros_bh
    hs = [zeros_bh]                              # prepended initial hidden state

    # ---- 2. LSTM recurrence, statically unrolled (T fixed & small) ----
    for t in range(T):
        gates = xg[t * B:(t + 1) * B, :] + jnp.dot(
            h, whh, preferred_element_type=jnp.float32)                      # (B, 4H)
        i_g = jax.nn.sigmoid(gates[:, 0 * H:1 * H])    # PyTorch gate order: i, f, g, o
        f_g = jax.nn.sigmoid(gates[:, 1 * H:2 * H])
        g_g = jnp.tanh(gates[:, 2 * H:3 * H])
        o_g = jax.nn.sigmoid(gates[:, 3 * H:4 * H])
        c_new = f_g * c + i_g * g_g
        h_new = o_g * jnp.tanh(c_new)
        v = valid[:, t:t + 1]                                                # (B, 1) bool
        # freeze state for finished sequences (pack_padded_sequence semantics),
        # zero the padded outputs (pad_packed_sequence semantics) — single selects.
        c = jnp.where(v, c_new, c)
        h = jnp.where(v, h_new, h)
        hs.append(jnp.where(v, h_new, zeros_bh))

    # ---- 3. relu(fc) + output layer, batched over all (T+1)*B positions plus ----
    #      the final frozen state (== h at step lengths[b]), appended as one extra
    #      row-block -> transition_contexts comes out of the same two matmuls,
    #      no gather / one-hot reduce needed.
    hs_all = jnp.concatenate(hs + [h], axis=0)                               # ((T+2)*B, H)
    hid = jnp.dot(hs_all, fc_w_ref[...],
                  preferred_element_type=jnp.float32) + fc_b_ref[...]
    hid = jnp.maximum(hid, 0.0)                                              # F.relu
    ctx = jnp.dot(hid, out_w_ref[...],
                  preferred_element_type=jnp.float32) + out_b_ref[...]       # ((T+2)*B, 128)

    allctx_ref[...] = ctx[:(T + 1) * B, :]    # sublane-aligned static slice (72 = 9*8 rows)
    tctx_ref[...] = ctx[(T + 1) * B:, :]      # last row-block = last-unpadded contexts


def _fused_contexts(transition_features, lengths_2d, p):
    vmem = pl.BlockSpec(memory_space=pltpu.MemorySpace.VMEM)   # whole array in VMEM
    return pl.pallas_call(
        _traj_fused_kernel,
        out_shape=(jax.ShapeDtypeStruct(((T + 1) * B, EOUT_PAD), jnp.float32),
                   jax.ShapeDtypeStruct((B, EOUT_PAD), jnp.float32)),
        in_specs=[vmem] * 9,
        out_specs=(vmem, vmem),
    )(transition_features, lengths_2d,
      p["w_in"], p["whh"], p["b_in"],
      p["fc_w"], p["fc_b"], p["out_w_pad"], p["out_b_pad"])


# ---------------- parameters (deterministic) ----------------
def init_params(seed=42):
    keys = jax.random.split(jax.random.PRNGKey(seed), 12)

    def unif(key, shape, fan_in):
        bound = 1.0 / jnp.sqrt(jnp.float32(fan_in))
        return jax.random.uniform(key, shape, jnp.float32, -bound, bound)

    return {
        # LinearEmbedder(DIN, E_TRANS) -- stored as (in, out)
        "trans_w": unif(keys[0], (DIN, E_TRANS), DIN),
        "trans_b": unif(keys[1], (E_TRANS,), DIN),
        # nn.LSTM(E_TRANS, 128): weight_ih (4H,E)->(E,4H), weight_hh (4H,H)->(H,4H)
        "lstm_wih": unif(keys[2], (E_TRANS, 4 * H), H),
        "lstm_whh": unif(keys[3], (H, 4 * H), H),
        "lstm_b": unif(keys[4], (4 * H,), H) + unif(keys[5], (4 * H,), H),   # b_ih + b_hh
        # nn.Linear(128, 128)
        "fc_w": unif(keys[6], (H, H), H),
        "fc_b": unif(keys[7], (H,), H),
        # nn.Linear(128, EMBED)
        "out_w": unif(keys[8], (H, EMBED), H),
        "out_b": unif(keys[9], (EMBED,), H),
        # FixedVocabEmbedder: nn.Embedding(VOCAB, EMBED), N(0,1) init
        "id_table": jax.random.normal(keys[10], (VOCAB, EMBED), jnp.float32),
    }


def fold_params(raw):
    """One-time algebraic fold + lane-padding of the kernel weights."""
    # (x @ Wt + bt) @ Wih + b  ==  x @ (Wt @ Wih) + (bt @ Wih + b)
    w_in = raw["trans_w"] @ raw["lstm_wih"]                                  # (DIN, 4H)
    b_in = raw["trans_b"] @ raw["lstm_wih"] + raw["lstm_b"]                  # (4H,)
    out_w_pad = jnp.zeros((H, EOUT_PAD), jnp.float32).at[:, :EMBED].set(raw["out_w"])
    out_b_pad = jnp.zeros((EOUT_PAD,), jnp.float32).at[:EMBED].set(raw["out_b"])
    # NOTE: on v6e/v7x these matmul weights could be cast to bf16 to halve weight
    # DMA; kept f32 here so the same kernel is optimal on v5e and numerics match.
    return {
        "w_in": w_in, "b_in": b_in.reshape(1, 4 * H),
        "whh": raw["lstm_whh"],
        "fc_w": raw["fc_w"], "fc_b": raw["fc_b"].reshape(1, H),
        "out_w_pad": out_w_pad, "out_b_pad": out_b_pad.reshape(1, EOUT_PAD),
        "id_table": raw["id_table"],
    }


# ---------------- forward ----------------
@partial(jax.jit, static_argnames=("use_ids",))
def trajectory_embedder_forward(params, transition_features, lengths, env_ids,
                                noise_key, use_ids=True):
    b, t, _ = transition_features.shape
    lengths_2d = lengths.reshape(b, 1).astype(jnp.int32)

    allctx_flat, tctx_pad = _fused_contexts(transition_features, lengths_2d, params)

    # Rows of allctx_flat are time-major (row = s*B + b); tiny relayout + un-pad
    # only for the aux (B, T+1, EMBED) view.  The main-path context came straight
    # out of the kernel's appended row-block — no transpose/gather on that path.
    all_transition_contexts = (allctx_flat.reshape(t + 1, b, EOUT_PAD)[:, :, :EMBED]
                               .transpose(1, 0, 2))                          # (B, T+1, EMBED)
    transition_contexts = tctx_pad[:, :EMBED]                                # (B, EMBED)

    # id embedding (nn.Embedding lookup)
    id_contexts = jnp.take(params["id_table"], env_ids, axis=0)              # (B, EMBED)

    # mask: prepended always-valid column + per-step validity
    step_mask = jnp.arange(t)[None, :] < lengths[:, None]
    mask = jnp.concatenate([jnp.ones((b, 1), dtype=bool), step_mask], axis=-1)

    # forward(): use_ids=True branch adds gaussian noise to the id contexts
    if use_ids:
        contexts = id_contexts + 0.1 * jax.random.normal(
            noise_key, id_contexts.shape, jnp.float32)
    else:
        contexts = transition_contexts

    # losses: matches reference torch.max((id_contexts ** 2).sum(-1), cutoff).mean()
    # TODO(synk): `transition_context_loss` is an undefined variable in the reference
    # `_compute_losses`; only the id-context loss is reproducible.
    cutoff = 10.0
    id_context_loss = jnp.mean(jnp.maximum(jnp.sum(id_contexts ** 2, axis=-1), cutoff))
    losses = {"id_context_loss": id_context_loss}

    return contexts, losses, (id_contexts, all_transition_contexts,
                              transition_contexts, mask)


# ---------------- pure-JAX reference (uses the UNfolded params) ----------------
def _reference_contexts(raw, x, lengths):
    te = (x.reshape(B * T, DIN) @ raw["trans_w"] + raw["trans_b"]).reshape(B, T, E_TRANS)
    h = jnp.zeros((B, H), jnp.float32)
    c = jnp.zeros((B, H), jnp.float32)
    outs = [jnp.zeros((B, H), jnp.float32)]
    for t in range(T):
        g = te[:, t, :] @ raw["lstm_wih"] + h @ raw["lstm_whh"] + raw["lstm_b"]
        i_g = jax.nn.sigmoid(g[:, :H]); f_g = jax.nn.sigmoid(g[:, H:2 * H])
        g_g = jnp.tanh(g[:, 2 * H:3 * H]); o_g = jax.nn.sigmoid(g[:, 3 * H:])
        c_new = f_g * c + i_g * g_g
        h_new = o_g * jnp.tanh(c_new)
        v = (lengths > t).astype(jnp.float32)[:, None]
        c = v * c_new + (1.0 - v) * c
        h = v * h_new + (1.0 - v) * h
        outs.append(h_new * v)
    hs = jnp.stack(outs, axis=1)                                             # (B, T+1, H)
    hid = jnp.maximum(hs @ raw["fc_w"] + raw["fc_b"], 0.0)
    allctx = hid @ raw["out_w"] + raw["out_b"]                               # (B, T+1, EMBED)
    tctx = jnp.take_along_axis(
        allctx, lengths.reshape(B, 1, 1).astype(jnp.int32), axis=1)[:, 0]    # (B, EMBED)
    return allctx, tctx


if __name__ == "__main__":
    key = jax.random.PRNGKey(0)
    k_feat, k_ids, k_noise = jax.random.split(key, 3)

    raw_params = init_params(seed=42)
    params = fold_params(raw_params)          # folded once at init

    # Synthetic padded trajectory batch.
    transition_features = jax.random.normal(k_feat, (B, T, DIN), jnp.float32)
    lengths = jnp.array([8, 5, 3, 8, 1, 6, 7, 2], dtype=jnp.int32)
    env_ids = jax.random.randint(k_ids, (B,), 0, VOCAB, jnp.int32)
    pad_mask = (jnp.arange(T)[None, :] < lengths[:, None]).astype(jnp.float32)
    transition_features = transition_features * pad_mask[:, :, None]         # utils.pad zeros

    contexts, losses, aux = trajectory_embedder_forward(
        params, transition_features, lengths, env_ids, k_noise, use_ids=True)

    jax.block_until_ready(contexts)
    jax.block_until_ready(losses["id_context_loss"])
    jax.block_until_ready(aux[1])

    assert contexts.shape == (B, EMBED)
    assert aux[1].shape == (B, T + 1, EMBED)
    assert aux[2].shape == (B, EMBED)
    assert aux[3].shape == (B, T + 1)

    # Correctness check against the pure-JAX reference (unfolded weights).
    ref_allctx, ref_tctx = _reference_contexts(raw_params, transition_features, lengths)
    assert jnp.allclose(aux[1], ref_allctx, atol=2e-3, rtol=2e-3)
    assert jnp.allclose(aux[2], ref_tctx, atol=2e-3, rtol=2e-3)

    print("KERNEL_OK")
</pallas_src>

<mosaic_0001>
module attributes {stable_mosaic.version = 11 : i64} {
  func.func @_traj_fused_kernel(%arg0: memref<8x8x16xf32, #tpu.memory_space<vmem>>, %arg1: memref<8x1xi32, #tpu.memory_space<vmem>>, %arg2: memref<16x512xf32, #tpu.memory_space<vmem>>, %arg3: memref<128x512xf32, #tpu.memory_space<vmem>>, %arg4: memref<1x512xf32, #tpu.memory_space<vmem>>, %arg5: memref<128x128xf32, #tpu.memory_space<vmem>>, %arg6: memref<1x128xf32, #tpu.memory_space<vmem>>, %arg7: memref<128x128xf32, #tpu.memory_space<vmem>>, %arg8: memref<1x128xf32, #tpu.memory_space<vmem>>, %arg9: memref<72x128xf32, #tpu.memory_space<vmem>>, %arg10: memref<8x128xf32, #tpu.memory_space<vmem>>) attributes {dimension_semantics = [], scalar_prefetch = 0 : i64, scratch_operands = 0 : i64, tpu.core_type = #tpu.core_type<tc>} {
    %c0 = arith.constant 0 : index
    %c0_0 = arith.constant 0 : index
    %c0_1 = arith.constant 0 : index
    %0 = vector.load %arg0[%c0, %c0_0, %c0_1] : memref<8x8x16xf32, #tpu.memory_space<vmem>>, vector<8x1x16xf32>
    %1 = vector.shape_cast %0 : vector<8x1x16xf32> to vector<8x16xf32>
    %c0_2 = arith.constant 0 : index
    %c1 = arith.constant 1 : index
    %c0_3 = arith.constant 0 : index
    %2 = vector.load %arg0[%c0_2, %c1, %c0_3] : memref<8x8x16xf32, #tpu.memory_space<vmem>>, vector<8x1x16xf32>
    %3 = vector.shape_cast %2 : vector<8x1x16xf32> to vector<8x16xf32>
    %c0_4 = arith.constant 0 : index
    %c2 = arith.constant 2 : index
    %c0_5 = arith.constant 0 : index
    %4 = vector.load %arg0[%c0_4, %c2, %c0_5] : memref<8x8x16xf32, #tpu.memory_space<vmem>>, vector<8x1x16xf32>
    %5 = vector.shape_cast %4 : vector<8x1x16xf32> to vector<8x16xf32>
    %c0_6 = arith.constant 0 : index
    %c3 = arith.constant 3 : index
    %c0_7 = arith.constant 0 : index
    %6 = vector.load %arg0[%c0_6, %c3, %c0_7] : memref<8x8x16xf32, #tpu.memory_space<vmem>>, vector<8x1x16xf32>
    %7 = vector.shape_cast %6 : vector<8x1x16xf32> to vector<8x16xf32>
    %c0_8 = arith.constant 0 : index
    %c4 = arith.constant 4 : index
    %c0_9 = arith.constant 0 : index
    %8 = vector.load %arg0[%c0_8, %c4, %c0_9] : memref<8x8x16xf32, #tpu.memory_space<vmem>>, vector<8x1x16xf32>
    %9 = vector.shape_cast %8 : vector<8x1x16xf32> to vector<8x16xf32>
    %c0_10 = arith.constant 0 : index
    %c5 = arith.constant 5 : index
    %c0_11 = arith.constant 0 : index
    %10 = vector.load %arg0[%c0_10, %c5, %c0_11] : memref<8x8x16xf32, #tpu.memory_space<vmem>>, vector<8x1x16xf32>
    %11 = vector.shape_cast %10 : vector<8x1x16xf32> to vector<8x16xf32>
    %c0_12 = arith.constant 0 : index
    %c6 = arith.constant 6 : index
    %c0_13 = arith.constant 0 : index
    %12 = vector.load %arg0[%c0_12, %c6, %c0_13] : memref<8x8x16xf32, #tpu.memory_space<vmem>>, vector<8x1x16xf32>
    %13 = vector.shape_cast %12 : vector<8x1x16xf32> to vector<8x16xf32>
    %c0_14 = arith.constant 0 : index
    %c7 = arith.constant 7 : index
    %c0_15 = arith.constant 0 : index
    %14 = vector.load %arg0[%c0_14, %c7, %c0_15] : memref<8x8x16xf32, #tpu.memory_space<vmem>>, vector<8x1x16xf32>
    %15 = vector.shape_cast %14 : vector<8x1x16xf32> to vector<8x16xf32>
    %16 = tpu.concatenate %1, %3, %5, %7, %9, %11, %13, %15 in 0 : vector<8x16xf32>, vector<8x16xf32>, vector<8x16xf32>, vector<8x16xf32>, vector<8x16xf32>, vector<8x16xf32>, vector<8x16xf32>, vector<8x16xf32> -> vector<64x16xf32>
    %c0_16 = arith.constant 0 : index
    %c0_17 = arith.constant 0 : index
    %17 = vector.load %arg2[%c0_16, %c0_17] : memref<16x512xf32, #tpu.memory_space<vmem>>, vector<16x512xf32>
    %cst = arith.constant dense<0.000000e+00> : vector<64x512xf32>
    %18 = tpu.matmul %16, %17, %cst {dimension_numbers = #tpu.dot_dimension_numbers<[1], [0], [0], [1], [0, 0, 1, 1], [], []>} : vector<64x16xf32>, vector<16x512xf32>, vector<64x512xf32> -> vector<64x512xf32>
    %c0_18 = arith.constant 0 : index
    %c0_19 = arith.constant 0 : index
    %19 = vector.load %arg4[%c0_18, %c0_19] : memref<1x512xf32, #tpu.memory_space<vmem>>, vector<1x512xf32>
    %20 = vector.broadcast %19 : vector<1x512xf32> to vector<64x512xf32>
    %21 = arith.addf %18, %20 : vector<64x512xf32>
    %c0_20 = arith.constant 0 : index
    %c0_21 = arith.constant 0 : index
    %22 = vector.load %arg1[%c0_20, %c0_21] : memref<8x1xi32, #tpu.memory_space<vmem>>, vector<8x1xi32>
    %23 = tpu.iota {dimensions = array<i32: 1>} : vector<8x8xi32>
    %24 = vector.broadcast %22 : vector<8x1xi32> to vector<8x8xi32>
    %25 = arith.cmpi slt, %23, %24 : vector<8x8xi32>
    %c0_22 = arith.constant 0 : index
    %c0_23 = arith.constant 0 : index
    %26 = vector.load %arg3[%c0_22, %c0_23] : memref<128x512xf32, #tpu.memory_space<vmem>>, vector<128x512xf32>
    %cst_24 = arith.constant 0.000000e+00 : f32
    %27 = vector.broadcast %cst_24 : f32 to vector<8x128xf32>
    %28 = vector.extract_strided_slice %21 {offsets = [0, 0], sizes = [8, 512], strides = [1, 1]} : vector<64x512xf32> to vector<8x512xf32>
    %cst_25 = arith.constant dense<0.000000e+00> : vector<8x512xf32>
    %29 = tpu.matmul %27, %26, %cst_25 {dimension_numbers = #tpu.dot_dimension_numbers<[1], [0], [0], [1], [0, 0, 1, 1], [], []>} : vector<8x128xf32>, vector<128x512xf32>, vector<8x512xf32> -> vector<8x512xf32>
    %30 = arith.addf %28, %29 : vector<8x512xf32>
    %31 = vector.extract_strided_slice %30 {offsets = [0, 0], sizes = [8, 128], strides = [1, 1]} : vector<8x512xf32> to vector<8x128xf32>
    %32 = arith.negf %31 : vector<8x128xf32>
    %33 = math.exp %32 : vector<8x128xf32>
    %cst_26 = arith.constant 1.000000e+00 : f32
    %34 = vector.broadcast %cst_26 : f32 to vector<8x128xf32>
    %35 = arith.addf %34, %33 : vector<8x128xf32>
    %36 = arith.divf %34, %35 : vector<8x128xf32>
    %37 = vector.extract_strided_slice %30 {offsets = [0, 128], sizes = [8, 128], strides = [1, 1]} : vector<8x512xf32> to vector<8x128xf32>
    %38 = arith.negf %37 : vector<8x128xf32>
    %39 = math.exp %38 : vector<8x128xf32>
    %cst_27 = arith.constant 1.000000e+00 : f32
    %40 = vector.broadcast %cst_27 : f32 to vector<8x128xf32>
    %41 = arith.addf %40, %39 : vector<8x128xf32>
    %42 = arith.divf %40, %41 : vector<8x128xf32>
    %43 = vector.extract_strided_slice %30 {offsets = [0, 256], sizes = [8, 128], strides = [1, 1]} : vector<8x512xf32> to vector<8x128xf32>
    %44 = math.tanh %43 : vector<8x128xf32>
    %45 = vector.extract_strided_slice %30 {offsets = [0, 384], sizes = [8, 128], strides = [1, 1]} : vector<8x512xf32> to vector<8x128xf32>
    %46 = arith.negf %45 : vector<8x128xf32>
    %47 = math.exp %46 : vector<8x128xf32>
    %cst_28 = arith.constant 1.000000e+00 : f32
    %48 = vector.broadcast %cst_28 : f32 to vector<8x128xf32>
    %49 = arith.addf %48, %47 : vector<8x128xf32>
    %50 = arith.divf %48, %49 : vector<8x128xf32>
    %51 = arith.mulf %42, %27 : vector<8x128xf32>
    %52 = arith.mulf %36, %44 : vector<8x128xf32>
    %53 = arith.addf %51, %52 : vector<8x128xf32>
    %54 = math.tanh %53 : vector<8x128xf32>
    %55 = arith.mulf %50, %54 : vector<8x128xf32>
    %56 = vector.extract_strided_slice %25 {offsets = [0, 0], sizes = [8, 1], strides = [1, 1]} : vector<8x8xi1> to vector<8x1xi1>
    %57 = vector.shape_cast %56 : vector<8x1xi1> to vector<8x1xi1>
    %58 = vector.broadcast %57 : vector<8x1xi1> to vector<8x128xi1>
    %59 = arith.select %58, %53, %27 : vector<8x128xi1>, vector<8x128xf32>
    %60 = vector.shape_cast %56 : vector<8x1xi1> to vector<8x1xi1>
    %61 = vector.broadcast %60 : vector<8x1xi1> to vector<8x128xi1>
    %62 = arith.select %61, %55, %27 : vector<8x128xi1>, vector<8x128xf32>
    %63 = vector.shape_cast %56 : vector<8x1xi1> to vector<8x1xi1>
    %64 = vector.broadcast %63 : vector<8x1xi1> to vector<8x128xi1>
    %65 = arith.select %64, %55, %27 : vector<8x128xi1>, vector<8x128xf32>
    %66 = vector.extract_strided_slice %21 {offsets = [8, 0], sizes = [8, 512], strides = [1, 1]} : vector<64x512xf32> to vector<8x512xf32>
    %cst_29 = arith.constant dense<0.000000e+00> : vector<8x512xf32>
    %67 = tpu.matmul %62, %26, %cst_29 {dimension_numbers = #tpu.dot_dimension_numbers<[1], [0], [0], [1], [0, 0, 1, 1], [], []>} : vector<8x128xf32>, vector<128x512xf32>, vector<8x512xf32> -> vector<8x512xf32>
    %68 = arith.addf %66, %67 : vector<8x512xf32>
    %69 = vector.extract_strided_slice %68 {offsets = [0, 0], sizes = [8, 128], strides = [1, 1]} : vector<8x512xf32> to vector<8x128xf32>
    %70 = arith.negf %69 : vector<8x128xf32>
    %71 = math.exp %70 : vector<8x128xf32>
    %cst_30 = arith.constant 1.000000e+00 : f32
    %72 = vector.broadcast %cst_30 : f32 to vector<8x128xf32>
    %73 = arith.addf %72, %71 : vector<8x128xf32>
    %74 = arith.divf %72, %73 : vector<8x128xf32>
    %75 = vector.extract_strided_slice %68 {offsets = [0, 128], sizes = [8, 128], strides = [1, 1]} : vector<8x512xf32> to vector<8x128xf32>
    %76 = arith.negf %75 : vector<8x128xf32>
    %77 = math.exp %76 : vector<8x128xf32>
    %cst_31 = arith.constant 1.000000e+00 : f32
    %78 = vector.broadcast %cst_31 : f32 to vector<8x128xf32>
    %79 = arith.addf %78, %77 : vector<8x128xf32>
    %80 = arith.divf %78, %79 : vector<8x128xf32>
    %81 = vector.extract_strided_slice %68 {offsets = [0, 256], sizes = [8, 128], strides = [1, 1]} : vector<8x512xf32> to vector<8x128xf32>
    %82 = math.tanh %81 : vector<8x128xf32>
    %83 = vector.extract_strided_slice %68 {offsets = [0, 384], sizes = [8, 128], strides = [1, 1]} : vector<8x512xf32> to vector<8x128xf32>
    %84 = arith.negf %83 : vector<8x128xf32>
    %85 = math.exp %84 : vector<8x128xf32>
    %cst_32 = arith.constant 1.000000e+00 : f32
    %86 = vector.broadcast %cst_32 : f32 to vector<8x128xf32>
    %87 = arith.addf %86, %85 : vector<8x128xf32>
    %88 = arith.divf %86, %87 : vector<8x128xf32>
    %89 = arith.mulf %80, %59 : vector<8x128xf32>
    %90 = arith.mulf %74, %82 : vector<8x128xf32>
    %91 = arith.addf %89, %90 : vector<8x128xf32>
    %92 = math.tanh %91 : vector<8x128xf32>
    %93 = arith.mulf %88, %92 : vector<8x128xf32>
    %94 = vector.extract_strided_slice %25 {offsets = [0, 1], sizes = [8, 1], strides = [1, 1]} : vector<8x8xi1> to vector<8x1xi1>
    %95 = vector.shape_cast %94 : vector<8x1xi1> to vector<8x1xi1>
    %96 = vector.broadcast %95 : vector<8x1xi1> to vector<8x128xi1>
    %97 = arith.select %96, %91, %59 : vector<8x128xi1>, vector<8x128xf32>
    %98 = vector.shape_cast %94 : vector<8x1xi1> to vector<8x1xi1>
    %99 = vector.broadcast %98 : vector<8x1xi1> to vector<8x128xi1>
    %100 = arith.select %99, %93, %62 : vector<8x128xi1>, vector<8x128xf32>
    %101 = vector.shape_cast %94 : vector<8x1xi1> to vector<8x1xi1>
    %102 = vector.broadcast %101 : vector<8x1xi1> to vector<8x128xi1>
    %103 = arith.select %102, %93, %27 : vector<8x128xi1>, vector<8x128xf32>
    %104 = vector.extract_strided_slice %21 {offsets = [16, 0], sizes = [8, 512], strides = [1, 1]} : vector<64x512xf32> to vector<8x512xf32>
    %cst_33 = arith.constant dense<0.000000e+00> : vector<8x512xf32>
    %105 = tpu.matmul %100, %26, %cst_33 {dimension_numbers = #tpu.dot_dimension_numbers<[1], [0], [0], [1], [0, 0, 1, 1], [], []>} : vector<8x128xf32>, vector<128x512xf32>, vector<8x512xf32> -> vector<8x512xf32>
    %106 = arith.addf %104, %105 : vector<8x512xf32>
    %107 = vector.extract_strided_slice %106 {offsets = [0, 0], sizes = [8, 128], strides = [1, 1]} : vector<8x512xf32> to vector<8x128xf32>
    %108 = arith.negf %107 : vector<8x128xf32>
    %109 = math.exp %108 : vector<8x128xf32>
    %cst_34 = arith.constant 1.000000e+00 : f32
    %110 = vector.broadcast %cst_34 : f32 to vector<8x128xf32>
    %111 = arith.addf %110, %109 : vector<8x128xf32>
    %112 = arith.divf %110, %111 : vector<8x128xf32>
    %113 = vector.extract_strided_slice %106 {offsets = [0, 128], sizes = [8, 128], strides = [1, 1]} : vector<8x512xf32> to vector<8x128xf32>
    %114 = arith.negf %113 : vector<8x128xf32>
    %115 = math.exp %114 : vector<8x128xf32>
    %cst_35 = arith.constant 1.000000e+00 : f32
    %116 = vector.broadcast %cst_35 : f32 to vector<8x128xf32>
    %117 = arith.addf %116, %115 : vector<8x128xf32>
    %118 = arith.divf %116, %117 : vector<8x128xf32>
    %119 = vector.extract_strided_slice %106 {offsets = [0, 256], sizes = [8, 128], strides = [1, 1]} : vector<8x512xf32> to vector<8x128xf32>
    %120 = math.tanh %119 : vector<8x128xf32>
    %121 = vector.extract_strided_slice %106 {offsets = [0, 384], sizes = [8, 128], strides = [1, 1]} : vector<8x512xf32> to vector<8x128xf32>
    %122 = arith.negf %121 : vector<8x128xf32>
    %123 = math.exp %122 : vector<8x128xf32>
    %cst_36 = arith.constant 1.000000e+00 : f32
    %124 = vector.broadcast %cst_36 : f32 to vector<8x128xf32>
    %125 = arith.addf %124, %123 : vector<8x128xf32>
    %126 = arith.divf %124, %125 : vector<8x128xf32>
    %127 = arith.mulf %118, %97 : vector<8x128xf32>
    %128 = arith.mulf %112, %120 : vector<8x128xf32>
    %129 = arith.addf %127, %128 : vector<8x128xf32>
    %130 = math.tanh %129 : vector<8x128xf32>
    %131 = arith.mulf %126, %130 : vector<8x128xf32>
    %132 = vector.extract_strided_slice %25 {offsets = [0, 2], sizes = [8, 1], strides = [1, 1]} : vector<8x8xi1> to vector<8x1xi1>
    %133 = vector.shape_cast %132 : vector<8x1xi1> to vector<8x1xi1>
    %134 = vector.broadcast %133 : vector<8x1xi1> to vector<8x128xi1>
    %135 = arith.select %134, %129, %97 : vector<8x128xi1>, vector<8x128xf32>
    %136 = vector.shape_cast %132 : vector<8x1xi1> to vector<8x1xi1>
    %137 = vector.broadcast %136 : vector<8x1xi1> to vector<8x128xi1>
    %138 = arith.select %137, %131, %100 : vector<8x128xi1>, vector<8x128xf32>
    %139 = vector.shape_cast %132 : vector<8x1xi1> to vector<8x1xi1>
    %140 = vector.broadcast %139 : vector<8x1xi1> to vector<8x128xi1>
    %141 = arith.select %140, %131, %27 : vector<8x128xi1>, vector<8x128xf32>
    %142 = vector.extract_strided_slice %21 {offsets = [24, 0], sizes = [8, 512], strides = [1, 1]} : vector<64x512xf32> to vector<8x512xf32>
    %cst_37 = arith.constant dense<0.000000e+00> : vector<8x512xf32>
    %143 = tpu.matmul %138, %26, %cst_37 {dimension_numbers = #tpu.dot_dimension_numbers<[1], [0], [0], [1], [0, 0, 1, 1], [], []>} : vector<8x128xf32>, vector<128x512xf32>, vector<8x512xf32> -> vector<8x512xf32>
    %144 = arith.addf %142, %143 : vector<8x512xf32>
    %145 = vector.extract_strided_slice %144 {offsets = [0, 0], sizes = [8, 128], strides = [1, 1]} : vector<8x512xf32> to vector<8x128xf32>
    %146 = arith.negf %145 : vector<8x128xf32>
    %147 = math.exp %146 : vector<8x128xf32>
    %cst_38 = arith.constant 1.000000e+00 : f32
    %148 = vector.broadcast %cst_38 : f32 to vector<8x128xf32>
    %149 = arith.addf %148, %147 : vector<8x128xf32>
    %150 = arith.divf %148, %149 : vector<8x128xf32>
    %151 = vector.extract_strided_slice %144 {offsets = [0, 128], sizes = [8, 128], strides = [1, 1]} : vector<8x512xf32> to vector<8x128xf32>
    %152 = arith.negf %151 : vector<8x128xf32>
    %153 = math.exp %152 : vector<8x128xf32>
    %cst_39 = arith.constant 1.000000e+00 : f32
    %154 = vector.broadcast %cst_39 : f32 to vector<8x128xf32>
    %155 = arith.addf %154, %153 : vector<8x128xf32>
    %156 = arith.divf %154, %155 : vector<8x128xf32>
    %157 = vector.extract_strided_slice %144 {offsets = [0, 256], sizes = [8, 128], strides = [1, 1]} : vector<8x512xf32> to vector<8x128xf32>
    %158 = math.tanh %157 : vector<8x128xf32>
    %159 = vector.extract_strided_slice %144 {offsets = [0, 384], sizes = [8, 128], strides = [1, 1]} : vector<8x512xf32> to vector<8x128xf32>
    %160 = arith.negf %159 : vector<8x128xf32>
    %161 = math.exp %160 : vector<8x128xf32>
    %cst_40 = arith.constant 1.000000e+00 : f32
    %162 = vector.broadcast %cst_40 : f32 to vector<8x128xf32>
    %163 = arith.addf %162, %161 : vector<8x128xf32>
    %164 = arith.divf %162, %163 : vector<8x128xf32>
    %165 = arith.mulf %156, %135 : vector<8x128xf32>
    %166 = arith.mulf %150, %158 : vector<8x128xf32>
    %167 = arith.addf %165, %166 : vector<8x128xf32>
    %168 = math.tanh %167 : vector<8x128xf32>
    %169 = arith.mulf %164, %168 : vector<8x128xf32>
    %170 = vector.extract_strided_slice %25 {offsets = [0, 3], sizes = [8, 1], strides = [1, 1]} : vector<8x8xi1> to vector<8x1xi1>
    %171 = vector.shape_cast %170 : vector<8x1xi1> to vector<8x1xi1>
    %172 = vector.broadcast %171 : vector<8x1xi1> to vector<8x128xi1>
    %173 = arith.select %172, %167, %135 : vector<8x128xi1>, vector<8x128xf32>
    %174 = vector.shape_cast %170 : vector<8x1xi1> to vector<8x1xi1>
    %175 = vector.broadcast %174 : vector<8x1xi1> to vector<8x128xi1>
    %176 = arith.select %175, %169, %138 : vector<8x128xi1>, vector<8x128xf32>
    %177 = vector.shape_cast %170 : vector<8x1xi1> to vector<8x1xi1>
    %178 = vector.broadcast %177 : vector<8x1xi1> to vector<8x128xi1>
    %179 = arith.select %178, %169, %27 : vector<8x128xi1>, vector<8x128xf32>
    %180 = vector.extract_strided_slice %21 {offsets = [32, 0], sizes = [8, 512], strides = [1, 1]} : vector<64x512xf32> to vector<8x512xf32>
    %cst_41 = arith.constant dense<0.000000e+00> : vector<8x512xf32>
    %181 = tpu.matmul %176, %26, %cst_41 {dimension_numbers = #tpu.dot_dimension_numbers<[1], [0], [0], [1], [0, 0, 1, 1], [], []>} : vector<8x128xf32>, vector<128x512xf32>, vector<8x512xf32> -> vector<8x512xf32>
    %182 = arith.addf %180, %181 : vector<8x512xf32>
    %183 = vector.extract_strided_slice %182 {offsets = [0, 0], sizes = [8, 128], strides = [1, 1]} : vector<8x512xf32> to vector<8x128xf32>
    %184 = arith.negf %183 : vector<8x128xf32>
    %185 = math.exp %184 : vector<8x128xf32>
    %cst_42 = arith.constant 1.000000e+00 : f32
    %186 = vector.broadcast %cst_42 : f32 to vector<8x128xf32>
    %187 = arith.addf %186, %185 : vector<8x128xf32>
    %188 = arith.divf %186, %187 : vector<8x128xf32>
    %189 = vector.extract_strided_slice %182 {offsets = [0, 128], sizes = [8, 128], strides = [1, 1]} : vector<8x512xf32> to vector<8x128xf32>
    %190 = arith.negf %189 : vector<8x128xf32>
    %191 = math.exp %190 : vector<8x128xf32>
    %cst_43 = arith.constant 1.000000e+00 : f32
    %192 = vector.broadcast %cst_43 : f32 to vector<8x128xf32>
    %193 = arith.addf %192, %191 : vector<8x128xf32>
    %194 = arith.divf %192, %193 : vector<8x128xf32>
    %195 = vector.extract_strided_slice %182 {offsets = [0, 256], sizes = [8, 128], strides = [1, 1]} : vector<8x512xf32> to vector<8x128xf32>
    %196 = math.tanh %195 : vector<8x128xf32>
    %197 = vector.extract_strided_slice %182 {offsets = [0, 384], sizes = [8, 128], strides = [1, 1]} : vector<8x512xf32> to vector<8x128xf32>
    %198 = arith.negf %197 : vector<8x128xf32>
    %199 = math.exp %198 : vector<8x128xf32>
    %cst_44 = arith.constant 1.000000e+00 : f32
    %200 = vector.broadcast %cst_44 : f32 to vector<8x128xf32>
    %201 = arith.addf %200, %199 : vector<8x128xf32>
    %202 = arith.divf %200, %201 : vector<8x128xf32>
    %203 = arith.mulf %194, %173 : vector<8x128xf32>
    %204 = arith.mulf %188, %196 : vector<8x128xf32>
    %205 = arith.addf %203, %204 : vector<8x128xf32>
    %206 = math.tanh %205 : vector<8x128xf32>
    %207 = arith.mulf %202, %206 : vector<8x128xf32>
    %208 = vector.extract_strided_slice %25 {offsets = [0, 4], sizes = [8, 1], strides = [1, 1]} : vector<8x8xi1> to vector<8x1xi1>
    %209 = vector.shape_cast %208 : vector<8x1xi1> to vector<8x1xi1>
    %210 = vector.broadcast %209 : vector<8x1xi1> to vector<8x128xi1>
    %211 = arith.select %210, %205, %173 : vector<8x128xi1>, vector<8x128xf32>
    %212 = vector.shape_cast %208 : vector<8x1xi1> to vector<8x1xi1>
    %213 = vector.broadcast %212 : vector<8x1xi1> to vector<8x128xi1>
    %214 = arith.select %213, %207, %176 : vector<8x128xi1>, vector<8x128xf32>
    %215 = vector.shape_cast %208 : vector<8x1xi1> to vector<8x1xi1>
    %216 = vector.broadcast %215 : vector<8x1xi1> to vector<8x128xi1>
    %217 = arith.select %216, %207, %27 : vector<8x128xi1>, vector<8x128xf32>
    %218 = vector.extract_strided_slice %21 {offsets = [40, 0], sizes = [8, 512], strides = [1, 1]} : vector<64x512xf32> to vector<8x512xf32>
    %cst_45 = arith.constant dense<0.000000e+00> : vector<8x512xf32>
    %219 = tpu.matmul %214, %26, %cst_45 {dimension_numbers = #tpu.dot_dimension_numbers<[1], [0], [0], [1], [0, 0, 1, 1], [], []>} : vector<8x128xf32>, vector<128x512xf32>, vector<8x512xf32> -> vector<8x512xf32>
    %220 = arith.addf %218, %219 : vector<8x512xf32>
    %221 = vector.extract_strided_slice %220 {offsets = [0, 0], sizes = [8, 128], strides = [1, 1]} : vector<8x512xf32> to vector<8x128xf32>
    %222 = arith.negf %221 : vector<8x128xf32>
    %223 = math.exp %222 : vector<8x128xf32>
    %cst_46 = arith.constant 1.000000e+00 : f32
    %224 = vector.broadcast %cst_46 : f32 to vector<8x128xf32>
    %225 = arith.addf %224, %223 : vector<8x128xf32>
    %226 = arith.divf %224, %225 : vector<8x128xf32>
    %227 = vector.extract_strided_slice %220 {offsets = [0, 128], sizes = [8, 128], strides = [1, 1]} : vector<8x512xf32> to vector<8x128xf32>
    %228 = arith.negf %227 : vector<8x128xf32>
    %229 = math.exp %228 : vector<8x128xf32>
    %cst_47 = arith.constant 1.000000e+00 : f32
    %230 = vector.broadcast %cst_47 : f32 to vector<8x128xf32>
    %231 = arith.addf %230, %229 : vector<8x128xf32>
    %232 = arith.divf %230, %231 : vector<8x128xf32>
    %233 = vector.extract_strided_slice %220 {offsets = [0, 256], sizes = [8, 128], strides = [1, 1]} : vector<8x512xf32> to vector<8x128xf32>
    %234 = math.tanh %233 : vector<8x128xf32>
    %235 = vector.extract_strided_slice %220 {offsets = [0, 384], sizes = [8, 128], strides = [1, 1]} : vector<8x512xf32> to vector<8x128xf32>
    %236 = arith.negf %235 : vector<8x128xf32>
    %237 = math.exp %236 : vector<8x128xf32>
    %cst_48 = arith.constant 1.000000e+00 : f32
    %238 = vector.broadcast %cst_48 : f32 to vector<8x128xf32>
    %239 = arith.addf %238, %237 : vector<8x128xf32>
    %240 = arith.divf %238, %239 : vector<8x128xf32>
    %241 = arith.mulf %232, %211 : vector<8x128xf32>
    %242 = arith.mulf %226, %234 : vector<8x128xf32>
    %243 = arith.addf %241, %242 : vector<8x128xf32>
    %244 = math.tanh %243 : vector<8x128xf32>
    %245 = arith.mulf %240, %244 : vector<8x128xf32>
    %246 = vector.extract_strided_slice %25 {offsets = [0, 5], sizes = [8, 1], strides = [1, 1]} : vector<8x8xi1> to vector<8x1xi1>
    %247 = vector.shape_cast %246 : vector<8x1xi1> to vector<8x1xi1>
    %248 = vector.broadcast %247 : vector<8x1xi1> to vector<8x128xi1>
    %249 = arith.select %248, %243, %211 : vector<8x128xi1>, vector<8x128xf32>
    %250 = vector.shape_cast %246 : vector<8x1xi1> to vector<8x1xi1>
    %251 = vector.broadcast %250 : vector<8x1xi1> to vector<8x128xi1>
    %252 = arith.select %251, %245, %214 : vector<8x128xi1>, vector<8x128xf32>
    %253 = vector.shape_cast %246 : vector<8x1xi1> to vector<8x1xi1>
    %254 = vector.broadcast %253 : vector<8x1xi1> to vector<8x128xi1>
    %255 = arith.select %254, %245, %27 : vector<8x128xi1>, vector<8x128xf32>
    %256 = vector.extract_strided_slice %21 {offsets = [48, 0], sizes = [8, 512], strides = [1, 1]} : vector<64x512xf32> to vector<8x512xf32>
    %cst_49 = arith.constant dense<0.000000e+00> : vector<8x512xf32>
    %257 = tpu.matmul %252, %26, %cst_49 {dimension_numbers = #tpu.dot_dimension_numbers<[1], [0], [0], [1], [0, 0, 1, 1], [], []>} : vector<8x128xf32>, vector<128x512xf32>, vector<8x512xf32> -> vector<8x512xf32>
    %258 = arith.addf %256, %257 : vector<8x512xf32>
    %259 = vector.extract_strided_slice %258 {offsets = [0, 0], sizes = [8, 128], strides = [1, 1]} : vector<8x512xf32> to vector<8x128xf32>
    %260 = arith.negf %259 : vector<8x128xf32>
    %261 = math.exp %260 : vector<8x128xf32>
    %cst_50 = arith.constant 1.000000e+00 : f32
    %262 = vector.broadcast %cst_50 : f32 to vector<8x128xf32>
    %263 = arith.addf %262, %261 : vector<8x128xf32>
    %264 = arith.divf %262, %263 : vector<8x128xf32>
    %265 = vector.extract_strided_slice %258 {offsets = [0, 128], sizes = [8, 128], strides = [1, 1]} : vector<8x512xf32> to vector<8x128xf32>
    %266 = arith.negf %265 : vector<8x128xf32>
    %267 = math.exp %266 : vector<8x128xf32>
    %cst_51 = arith.constant 1.000000e+00 : f32
    %268 = vector.broadcast %cst_51 : f32 to vector<8x128xf32>
    %269 = arith.addf %268, %267 : vector<8x128xf32>
    %270 = arith.divf %268, %269 : vector<8x128xf32>
    %271 = vector.extract_strided_slice %258 {offsets = [0, 256], sizes = [8, 128], strides = [1, 1]} : vector<8x512xf32> to vector<8x128xf32>
    %272 = math.tanh %271 : vector<8x128xf32>
    %273 = vector.extract_strided_slice %258 {offsets = [0, 384], sizes = [8, 128], strides = [1, 1]} : vector<8x512xf32> to vector<8x128xf32>
    %274 = arith.negf %273 : vector<8x128xf32>
    %275 = math.exp %274 : vector<8x128xf32>
    %cst_52 = arith.constant 1.000000e+00 : f32
    %276 = vector.broadcast %cst_52 : f32 to vector<8x128xf32>
    %277 = arith.addf %276, %275 : vector<8x128xf32>
    %278 = arith.divf %276, %277 : vector<8x128xf32>
    %279 = arith.mulf %270, %249 : vector<8x128xf32>
    %280 = arith.mulf %264, %272 : vector<8x128xf32>
    %281 = arith.addf %279, %280 : vector<8x128xf32>
    %282 = math.tanh %281 : vector<8x128xf32>
    %283 = arith.mulf %278, %282 : vector<8x128xf32>
    %284 = vector.extract_strided_slice %25 {offsets = [0, 6], sizes = [8, 1], strides = [1, 1]} : vector<8x8xi1> to vector<8x1xi1>
    %285 = vector.shape_cast %284 : vector<8x1xi1> to vector<8x1xi1>
    %286 = vector.broadcast %285 : vector<8x1xi1> to vector<8x128xi1>
    %287 = arith.select %286, %281, %249 : vector<8x128xi1>, vector<8x128xf32>
    %288 = vector.shape_cast %284 : vector<8x1xi1> to vector<8x1xi1>
    %289 = vector.broadcast %288 : vector<8x1xi1> to vector<8x128xi1>
    %290 = arith.select %289, %283, %252 : vector<8x128xi1>, vector<8x128xf32>
    %291 = vector.shape_cast %284 : vector<8x1xi1> to vector<8x1xi1>
    %292 = vector.broadcast %291 : vector<8x1xi1> to vector<8x128xi1>
    %293 = arith.select %292, %283, %27 : vector<8x128xi1>, vector<8x128xf32>
    %294 = vector.extract_strided_slice %21 {offsets = [56, 0], sizes = [8, 512], strides = [1, 1]} : vector<64x512xf32> to vector<8x512xf32>
    %cst_53 = arith.constant dense<0.000000e+00> : vector<8x512xf32>
    %295 = tpu.matmul %290, %26, %cst_53 {dimension_numbers = #tpu.dot_dimension_numbers<[1], [0], [0], [1], [0, 0, 1, 1], [], []>} : vector<8x128xf32>, vector<128x512xf32>, vector<8x512xf32> -> vector<8x512xf32>
    %296 = arith.addf %294, %295 : vector<8x512xf32>
    %297 = vector.extract_strided_slice %296 {offsets = [0, 0], sizes = [8, 128], strides = [1, 1]} : vector<8x512xf32> to vector<8x128xf32>
    %298 = arith.negf %297 : vector<8x128xf32>
    %299 = math.exp %298 : vector<8x128xf32>
    %cst_54 = arith.constant 1.000000e+00 : f32
    %300 = vector.broadcast %cst_54 : f32 to vector<8x128xf32>
    %301 = arith.addf %300, %299 : vector<8x128xf32>
    %302 = arith.divf %300, %301 : vector<8x128xf32>
    %303 = vector.extract_strided_slice %296 {offsets = [0, 128], sizes = [8, 128], strides = [1, 1]} : vector<8x512xf32> to vector<8x128xf32>
    %304 = arith.negf %303 : vector<8x128xf32>
    %305 = math.exp %304 : vector<8x128xf32>
    %cst_55 = arith.constant 1.000000e+00 : f32
    %306 = vector.broadcast %cst_55 : f32 to vector<8x128xf32>
    %307 = arith.addf %306, %305 : vector<8x128xf32>
    %308 = arith.divf %306, %307 : vector<8x128xf32>
    %309 = vector.extract_strided_slice %296 {offsets = [0, 256], sizes = [8, 128], strides = [1, 1]} : vector<8x512xf32> to vector<8x128xf32>
    %310 = math.tanh %309 : vector<8x128xf32>
    %311 = vector.extract_strided_slice %296 {offsets = [0, 384], sizes = [8, 128], strides = [1, 1]} : vector<8x512xf32> to vector<8x128xf32>
    %312 = arith.negf %311 : vector<8x128xf32>
    %313 = math.exp %312 : vector<8x128xf32>
    %cst_56 = arith.constant 1.000000e+00 : f32
    %314 = vector.broadcast %cst_56 : f32 to vector<8x128xf32>
    %315 = arith.addf %314, %313 : vector<8x128xf32>
    %316 = arith.divf %314, %315 : vector<8x128xf32>
    %317 = arith.mulf %308, %287 : vector<8x128xf32>
    %318 = arith.mulf %302, %310 : vector<8x128xf32>
    %319 = arith.addf %317, %318 : vector<8x128xf32>
    %320 = math.tanh %319 : vector<8x128xf32>
    %321 = arith.mulf %316, %320 : vector<8x128xf32>
    %322 = vector.extract_strided_slice %25 {offsets = [0, 7], sizes = [8, 1], strides = [1, 1]} : vector<8x8xi1> to vector<8x1xi1>
    %323 = vector.shape_cast %322 : vector<8x1xi1> to vector<8x1xi1>
    %324 = vector.broadcast %323 : vector<8x1xi1> to vector<8x128xi1>
    %325 = arith.select %324, %321, %290 : vector<8x128xi1>, vector<8x128xf32>
    %326 = vector.shape_cast %322 : vector<8x1xi1> to vector<8x1xi1>
    %327 = vector.broadcast %326 : vector<8x1xi1> to vector<8x128xi1>
    %328 = arith.select %327, %321, %27 : vector<8x128xi1>, vector<8x128xf32>
    %329 = tpu.concatenate %27, %65, %103, %141, %179, %217, %255, %293, %328, %325 in 0 : vector<8x128xf32>, vector<8x128xf32>, vector<8x128xf32>, vector<8x128xf32>, vector<8x128xf32>, vector<8x128xf32>, vector<8x128xf32>, vector<8x128xf32>, vector<8x128xf32>, vector<8x128xf32> -> vector<80x128xf32>
    %c0_57 = arith.constant 0 : index
    %c0_58 = arith.constant 0 : index
    %330 = vector.load %arg5[%c0_57, %c0_58] : memref<128x128xf32, #tpu.memory_space<vmem>>, vector<128x128xf32>
    %cst_59 = arith.constant dense<0.000000e+00> : vector<80x128xf32>
    %331 = tpu.matmul %329, %330, %cst_59 {dimension_numbers = #tpu.dot_dimension_numbers<[1], [0], [0], [1], [0, 0, 1, 1], [], []>} : vector<80x128xf32>, vector<128x128xf32>, vector<80x128xf32> -> vector<80x128xf32>
    %c0_60 = arith.constant 0 : index
    %c0_61 = arith.constant 0 : index
    %332 = vector.load %arg6[%c0_60, %c0_61] : memref<1x128xf32, #tpu.memory_space<vmem>>, vector<1x128xf32>
    %333 = vector.broadcast %332 : vector<1x128xf32> to vector<80x128xf32>
    %334 = arith.addf %331, %333 : vector<80x128xf32>
    %cst_62 = arith.constant 0.000000e+00 : f32
    %335 = vector.broadcast %cst_62 : f32 to vector<80x128xf32>
    %336 = arith.maximumf %334, %335 : vector<80x128xf32>
    %c0_63 = arith.constant 0 : index
    %c0_64 = arith.constant 0 : index
    %337 = vector.load %arg7[%c0_63, %c0_64] : memref<128x128xf32, #tpu.memory_space<vmem>>, vector<128x128xf32>
    %cst_65 = arith.constant dense<0.000000e+00> : vector<80x128xf32>
    %338 = tpu.matmul %336, %337, %cst_65 {dimension_numbers = #tpu.dot_dimension_numbers<[1], [0], [0], [1], [0, 0, 1, 1], [], []>} : vector<80x128xf32>, vector<128x128xf32>, vector<80x128xf32> -> vector<80x128xf32>
    %c0_66 = arith.constant 0 : index
    %c0_67 = arith.constant 0 : index
    %339 = vector.load %arg8[%c0_66, %c0_67] : memref<1x128xf32, #tpu.memory_space<vmem>>, vector<1x128xf32>
    %340 = vector.broadcast %339 : vector<1x128xf32> to vector<80x128xf32>
    %341 = arith.addf %338, %340 : vector<80x128xf32>
    %342 = vector.extract_strided_slice %341 {offsets = [0, 0], sizes = [72, 128], strides = [1, 1]} : vector<80x128xf32> to vector<72x128xf32>
    %c0_68 = arith.constant 0 : index
    %c0_69 = arith.constant 0 : index
    %343 = vector.load %arg9[%c0_68, %c0_69] : memref<72x128xf32, #tpu.memory_space<vmem>>, vector<72x128xf32>
    tpu.vector_store %arg9[%c0_68, %c0_69], %342 {strides = array<i32>} : memref<72x128xf32, #tpu.memory_space<vmem>>, vector<72x128xf32>,
    %344 = vector.extract_strided_slice %341 {offsets = [72, 0], sizes = [8, 128], strides = [1, 1]} : vector<80x128xf32> to vector<8x128xf32>
    %c0_70 = arith.constant 0 : index
    %c0_71 = arith.constant 0 : index
    %345 = vector.load %arg10[%c0_70, %c0_71] : memref<8x128xf32, #tpu.memory_space<vmem>>, vector<8x128xf32>
    tpu.vector_store %arg10[%c0_70, %c0_71], %344 {strides = array<i32>} : memref<8x128xf32, #tpu.memory_space<vmem>>, vector<8x128xf32>,
    return
  }
}

</mosaic_0001>

<llo_original>
// kernel: trajectory_embedder_forward.1
$region0: #{trajectory_embedder_forward.1}
  #allocation0 [shape = 'u32[]', space=smem, size = 0x4, offset = 0x4, fixed_abs, tag = 'smem constant byte address 0x4 - core index']
  #allocation1 [shape = 'u32[144,128]{1,0:T(1,128)}', space=vmem, size = 0x12000, scoped, tag = 'internal scratch']
  %s0 = inlined_call_operand.vmem [shape: f32[8,8,16], index: 0, kind: input, shape index: {}]
  %s1 = inlined_call_operand.vmem [shape: s32[8,1], index: 1, kind: input, shape index: {}]
  %s2 = inlined_call_operand.hbm [shape: f32[16,512], index: 2, kind: input, shape index: {}]
  %s3 = inlined_call_operand.hbm [shape: f32[128,512], index: 3, kind: input, shape index: {}]
  %s4 = inlined_call_operand.vmem [shape: f32[1,512], index: 4, kind: input, shape index: {}]
  %s5 = inlined_call_operand.vmem [shape: f32[128,128], index: 5, kind: input, shape index: {}]
  %s6 = inlined_call_operand.vmem [shape: f32[1,128], index: 6, kind: input, shape index: {}]
  %s7 = inlined_call_operand.hbm [shape: f32[128,128], index: 7, kind: input, shape index: {}]
  %s8 = inlined_call_operand.vmem [shape: f32[1,128], index: 8, kind: input, shape index: {}]
  %s9 = inlined_call_operand.vmem [shape: f32[72,128], index: 9, kind: output, shape index: {0}]
  %s10 = inlined_call_operand.hbm [shape: f32[8,128], index: 10, kind: output, shape index: {1}]
  %11 = xla_tuple %s9, %s10
  %s12 = sld [smem:[#allocation0]]
  $region66: #{trajectory_embedder_forward.1} parent=0
    _
  %s14 = ssub.s32 1, %s12
  %s15 = scalar_select 0, %s14, %s12
  $region1: #{trajectory_embedder_forward.1} parent=0
    #allocation2 [shape = 'u8[32768]{0}', space=vmem, size = 0x8000, scoped, tag = 'input window, operand 2, single buffered']
    #allocation3 [shape = 's32[1]{0}', space=sflag, size = 0x4, scoped, tag = 'scoped memory for trajectory_embedder_forward.1']
    #allocation4 [shape = 's32[1]{0}', space=sflag, size = 0x4, scoped, tag = 'scoped memory for trajectory_embedder_forward.1']
    #allocation5 [shape = 'u8[262144]{0}', space=vmem, size = 0x40000, scoped, tag = 'input window, operand 3, single buffered']
    #allocation6 [shape = 's32[1]{0}', space=sflag, size = 0x4, scoped, tag = 'scoped memory for trajectory_embedder_forward.1']
    #allocation7 [shape = 'u8[65536]{0}', space=vmem, size = 0x10000, scoped, tag = 'input window, operand 7, single buffered']
    #allocation8 [shape = 'u8[4096]{0}', space=vmem, size = 0x1000, scoped, tag = 'output window, operand 1, single buffered']
    %16 = vsyncpa [#allocation3], 0
    %17 = vsyncpa [#allocation6], 0
    %18 = vsyncpa [#allocation4], 0
    // Predicated region
    $region2: #{trajectory_embedder_forward.1} parent=1 // pred_check
      _
    $region3: #{trajectory_embedder_forward.1} parent=1 // pred_check_branch
      %20 = sbr.rel (0) target = $region5
    $region4: #{trajectory_embedder_forward.1} parent=1 // pred_region
      _
    $region5: #{trajectory_embedder_forward.1} parent=1 // pred_fallthru
      _
    // Predicated region
    $region6: #{trajectory_embedder_forward.1} parent=1 // pred_check
      _
    $region7: #{trajectory_embedder_forward.1} parent=1 // pred_check_branch
      %22 = sbr.rel (0) target = $region9
    $region8: #{trajectory_embedder_forward.1} parent=1 // pred_region
      _
    $region9: #{trajectory_embedder_forward.1} parent=1 // pred_fallthru
      _
    // Predicated region
    $region10: #{trajectory_embedder_forward.1} parent=1 // pred_check
      _
    $region11: #{trajectory_embedder_forward.1} parent=1 // pred_check_branch
      %24 = sbr.rel (0) target = $region13
    $region12: #{trajectory_embedder_forward.1} parent=1 // pred_region
      %s26 = ssub.s32 1024, 1024
      %27 = vsyncadd [#allocation3], %s26
      %s28 = sshll.u32 [#allocation2], 4
      %s29 = int_to_ptr.vmem [resolvable:$true] %s28
      %34 = dma.hbm_to_vmem [thread:$0]  %s2, 1024, %s29, [#allocation3], 512, 512, 32
    $region13: #{trajectory_embedder_forward.1} parent=1 // pred_fallthru
      _
    // Predicated region
    $region14: #{trajectory_embedder_forward.1} parent=1 // pred_check
      _
    $region15: #{trajectory_embedder_forward.1} parent=1 // pred_check_branch
      %36 = sbr.rel (0) target = $region17
    $region16: #{trajectory_embedder_forward.1} parent=1 // pred_region
      %s38 = ssub.s32 8192, 8192
      %39 = vsyncadd [#allocation6], %s38
      %s40 = sshll.u32 [#allocation5], 4
      %s41 = int_to_ptr.vmem [resolvable:$true] %s40
      %46 = dma.hbm_to_vmem [thread:$0]  %s3, 8192, %s41, [#allocation6], 512, 512, 32
    $region17: #{trajectory_embedder_forward.1} parent=1 // pred_fallthru
      _
    // Predicated region
    $region18: #{trajectory_embedder_forward.1} parent=1 // pred_check
      _
    $region19: #{trajectory_embedder_forward.1} parent=1 // pred_check_branch
      %48 = sbr.rel (0) target = $region21
    $region20: #{trajectory_embedder_forward.1} parent=1 // pred_region
      _
    $region21: #{trajectory_embedder_forward.1} parent=1 // pred_fallthru
      _
    // Predicated region
    $region22: #{trajectory_embedder_forward.1} parent=1 // pred_check
      _
    $region23: #{trajectory_embedder_forward.1} parent=1 // pred_check_branch
      %50 = sbr.rel (0) target = $region25
    $region24: #{trajectory_embedder_forward.1} parent=1 // pred_region
      _
    $region25: #{trajectory_embedder_forward.1} parent=1 // pred_fallthru
      _
    // Predicated region
    $region26: #{trajectory_embedder_forward.1} parent=1 // pred_check
      _
    $region27: #{trajectory_embedder_forward.1} parent=1 // pred_check_branch
      %52 = sbr.rel (0) target = $region29
    $region28: #{trajectory_embedder_forward.1} parent=1 // pred_region
      _
    $region29: #{trajectory_embedder_forward.1} parent=1 // pred_fallthru
      _
    // Predicated region
    $region30: #{trajectory_embedder_forward.1} parent=1 // pred_check
      _
    $region31: #{trajectory_embedder_forward.1} parent=1 // pred_check_branch
      %54 = sbr.rel (0) target = $region33
    $region32: #{trajectory_embedder_forward.1} parent=1 // pred_region
      %s56 = ssub.s32 2048, 2048
      %57 = vsyncadd [#allocation6], %s56
      %s58 = sshll.u32 [#allocation7], 4
      %s59 = int_to_ptr.vmem [resolvable:$true] %s58
      %64 = dma.hbm_to_vmem [thread:$0]  %s7, 2048, %s59, [#allocation6], 128, 128, 8
    $region33: #{trajectory_embedder_forward.1} parent=1 // pred_fallthru
      _
    // Predicated region
    $region34: #{trajectory_embedder_forward.1} parent=1 // pred_check
      _
    $region35: #{trajectory_embedder_forward.1} parent=1 // pred_check_branch
      %66 = sbr.rel (0) target = $region37
    $region36: #{trajectory_embedder_forward.1} parent=1 // pred_region
      _
    $region37: #{trajectory_embedder_forward.1} parent=1 // pred_fallthru
      _
    // Predicated region
    $region38: #{trajectory_embedder_forward.1} parent=1 // pred_check
      _
    $region39: #{trajectory_embedder_forward.1} parent=1 // pred_check_branch
      %68 = sbr.rel (0) target = $region41
    $region40: #{trajectory_embedder_forward.1} parent=1 // pred_region
      %69 = dma.done [#allocation3], 1024
    $region41: #{trajectory_embedder_forward.1} parent=1 // pred_fallthru
      _
    // Predicated region
    $region42: #{trajectory_embedder_forward.1} parent=1 // pred_check
      _
    $region43: #{trajectory_embedder_forward.1} parent=1 // pred_check_branch
      %71 = sbr.rel (0) target = $region45
    $region44: #{trajectory_embedder_forward.1} parent=1 // pred_region
      %72 = dma.done [#allocation6], 8192
    $region45: #{trajectory_embedder_forward.1} parent=1 // pred_fallthru
      _
    // Predicated region
    $region46: #{trajectory_embedder_forward.1} parent=1 // pred_check
      _
    $region47: #{trajectory_embedder_forward.1} parent=1 // pred_check_branch
      %74 = sbr.rel (0) target = $region49
    $region48: #{trajectory_embedder_forward.1} parent=1 // pred_region
      %75 = dma.done [#allocation6], 2048
    $region49: #{trajectory_embedder_forward.1} parent=1 // pred_fallthru
      _
    %v76 = vld [vmem:[%s0] sm:$0x1]
    %v77 = vld [vmem:[%s0 + $0x8] sm:$0x1]
    %v78 = vld [vmem:[%s0 + $0x10] sm:$0x1]
    %v79 = vld [vmem:[%s0 + $0x18] sm:$0x1]
    %v80 = vld [vmem:[%s0 + $0x20] sm:$0x1]
    %v81 = vld [vmem:[%s0 + $0x28] sm:$0x1]
    %v82 = vld [vmem:[%s0 + $0x30] sm:$0x1]
    %v83 = vld [vmem:[%s0 + $0x38] sm:$0x1]
    %v84 = vld [vmem:[%s0 + $0x1] sm:$0x1]
    %v85 = vld [vmem:[%s0 + $0x9] sm:$0x1]
    %v86 = vld [vmem:[%s0 + $0x11] sm:$0x1]
    %v87 = vld [vmem:[%s0 + $0x19] sm:$0x1]
    %v88 = vld [vmem:[%s0 + $0x21] sm:$0x1]
    %v89 = vld [vmem:[%s0 + $0x29] sm:$0x1]
    %v90 = vld [vmem:[%s0 + $0x31] sm:$0x1]
    %v91 = vld [vmem:[%s0 + $0x39] sm:$0x1]
    %v92 = vld [vmem:[%s0 + $0x2] sm:$0x1]
    %v93 = vld [vmem:[%s0 + $0xa] sm:$0x1]
    %v94 = vld [vmem:[%s0 + $0x12] sm:$0x1]
    %v95 = vld [vmem:[%s0 + $0x1a] sm:$0x1]
    %v96 = vld [vmem:[%s0 + $0x22] sm:$0x1]
    %v97 = vld [vmem:[%s0 + $0x2a] sm:$0x1]
    %v98 = vld [vmem:[%s0 + $0x32] sm:$0x1]
    %v99 = vld [vmem:[%s0 + $0x3a] sm:$0x1]
    %v100 = vld [vmem:[%s0 + $0x3] sm:$0x1]
    %v101 = vld [vmem:[%s0 + $0xb] sm:$0x1]
    %v102 = vld [vmem:[%s0 + $0x13] sm:$0x1]
    %v103 = vld [vmem:[%s0 + $0x1b] sm:$0x1]
    %v104 = vld [vmem:[%s0 + $0x23] sm:$0x1]
    %v105 = vld [vmem:[%s0 + $0x2b] sm:$0x1]
    %v106 = vld [vmem:[%s0 + $0x33] sm:$0x1]
    %v107 = vld [vmem:[%s0 + $0x3b] sm:$0x1]
    %v108 = vld [vmem:[%s0 + $0x4] sm:$0x1]
    %v109 = vld [vmem:[%s0 + $0xc] sm:$0x1]
    %v110 = vld [vmem:[%s0 + $0x14] sm:$0x1]
    %v111 = vld [vmem:[%s0 + $0x1c] sm:$0x1]
    %v112 = vld [vmem:[%s0 + $0x24] sm:$0x1]
    %v113 = vld [vmem:[%s0 + $0x2c] sm:$0x1]
    %v114 = vld [vmem:[%s0 + $0x34] sm:$0x1]
    %v115 = vld [vmem:[%s0 + $0x3c] sm:$0x1]
    %v116 = vld [vmem:[%s0 + $0x5] sm:$0x1]
    %v117 = vld [vmem:[%s0 + $0xd] sm:$0x1]
    %v118 = vld [vmem:[%s0 + $0x15] sm:$0x1]
    %v119 = vld [vmem:[%s0 + $0x1d] sm:$0x1]
    %v120 = vld [vmem:[%s0 + $0x25] sm:$0x1]
    %v121 = vld [vmem:[%s0 + $0x2d] sm:$0x1]
    %v122 = vld [vmem:[%s0 + $0x35] sm:$0x1]
    %v123 = vld [vmem:[%s0 + $0x3d] sm:$0x1]
    %v124 = vld [vmem:[%s0 + $0x6] sm:$0x1]
    %v125 = vld [vmem:[%s0 + $0xe] sm:$0x1]
    %v126 = vld [vmem:[%s0 + $0x16] sm:$0x1]
    %v127 = vld [vmem:[%s0 + $0x1e] sm:$0x1]
    %v128 = vld [vmem:[%s0 + $0x26] sm:$0x1]
    %v129 = vld [vmem:[%s0 + $0x2e] sm:$0x1]
    %v130 = vld [vmem:[%s0 + $0x36] sm:$0x1]
    %v131 = vld [vmem:[%s0 + $0x3e] sm:$0x1]
    %v132 = vld [vmem:[%s0 + $0x7] sm:$0x1]
    %v133 = vld [vmem:[%s0 + $0xf] sm:$0x1]
    %v134 = vld [vmem:[%s0 + $0x17] sm:$0x1]
    %v135 = vld [vmem:[%s0 + $0x1f] sm:$0x1]
    %v136 = vld [vmem:[%s0 + $0x27] sm:$0x1]
    %v137 = vld [vmem:[%s0 + $0x2f] sm:$0x1]
    %v138 = vld [vmem:[%s0 + $0x37] sm:$0x1]
    %v139 = vld [vmem:[%s0 + $0x3f] sm:$0x1]
    %v148 = vrot.slane %v77, 7
    %vm149 = vcmask 1041409
    %v150 = vsel %vm149, %v148, %v76
    %v151 = vrot.slane %v78, 6
    %vm152 = vcmask 1042434
    %v153 = vsel %vm152, %v151, %v150
    %v154 = vrot.slane %v79, 5
    %vm155 = vcmask 1043459
    %v156 = vsel %vm155, %v154, %v153
    %v157 = vrot.slane %v80, 4
    %vm158 = vcmask 1044484
    %v159 = vsel %vm158, %v157, %v156
    %v160 = vrot.slane %v81, 3
    %vm161 = vcmask 1045509
    %v162 = vsel %vm161, %v160, %v159
    %v163 = vrot.slane %v82, 2
    %vm164 = vcmask 1046534
    %v165 = vsel %vm164, %v163, %v162
    %v166 = vrot.slane %v83, 1
    %vm167 = vcmask 1047559
    %v168 = vsel %vm167, %v166, %v165
    %v177 = vrot.slane %v85, 7
    %v178 = vsel %vm149, %v177, %v84
    %v179 = vrot.slane %v86, 6
    %v180 = vsel %vm152, %v179, %v178
    %v181 = vrot.slane %v87, 5
    %v182 = vsel %vm155, %v181, %v180
    %v183 = vrot.slane %v88, 4
    %v184 = vsel %vm158, %v183, %v182
    %v185 = vrot.slane %v89, 3
    %v186 = vsel %vm161, %v185, %v184
    %v187 = vrot.slane %v90, 2
    %v188 = vsel %vm164, %v187, %v186
    %v189 = vrot.slane %v91, 1
    %v190 = vsel %vm167, %v189, %v188
    %v199 = vrot.slane %v93, 7
    %v200 = vsel %vm149, %v199, %v92
    %v201 = vrot.slane %v94, 6
    %v202 = vsel %vm152, %v201, %v200
    %v203 = vrot.slane %v95, 5
    %v204 = vsel %vm155, %v203, %v202
    %v205 = vrot.slane %v96, 4
    %v206 = vsel %vm158, %v205, %v204
    %v207 = vrot.slane %v97, 3
    %v208 = vsel %vm161, %v207, %v206
    %v209 = vrot.slane %v98, 2
    %v210 = vsel %vm164, %v209, %v208
    %v211 = vrot.slane %v99, 1
    %v212 = vsel %vm167, %v211, %v210
    %v221 = vrot.slane %v101, 7
    %v222 = vsel %vm149, %v221, %v100
    %v223 = vrot.slane %v102, 6
    %v224 = vsel %vm152, %v223, %v222
    %v225 = vrot.slane %v103, 5
    %v226 = vsel %vm155, %v225, %v224
    %v227 = vrot.slane %v104, 4
    %v228 = vsel %vm158, %v227, %v226
    %v229 = vrot.slane %v105, 3
    %v230 = vsel %vm161, %v229, %v228
    %v231 = vrot.slane %v106, 2
    %v232 = vsel %vm164, %v231, %v230
    %v233 = vrot.slane %v107, 1
    %v234 = vsel %vm167, %v233, %v232
    %v243 = vrot.slane %v109, 7
    %v244 = vsel %vm149, %v243, %v108
    %v245 = vrot.slane %v110, 6
    %v246 = vsel %vm152, %v245, %v244
    %v247 = vrot.slane %v111, 5
    %v248 = vsel %vm155, %v247, %v246
    %v249 = vrot.slane %v112, 4
    %v250 = vsel %vm158, %v249, %v248
    %v251 = vrot.slane %v113, 3
    %v252 = vsel %vm161, %v251, %v250
    %v253 = vrot.slane %v114, 2
    %v254 = vsel %vm164, %v253, %v252
    %v255 = vrot.slane %v115, 1
    %v256 = vsel %vm167, %v255, %v254
    %v265 = vrot.slane %v117, 7
    %v266 = vsel %vm149, %v265, %v116
    %v267 = vrot.slane %v118, 6
    %v268 = vsel %vm152, %v267, %v266
    %v269 = vrot.slane %v119, 5
    %v270 = vsel %vm155, %v269, %v268
    %v271 = vrot.slane %v120, 4
    %v272 = vsel %vm158, %v271, %v270
    %v273 = vrot.slane %v121, 3
    %v274 = vsel %vm161, %v273, %v272
    %v275 = vrot.slane %v122, 2
    %v276 = vsel %vm164, %v275, %v274
    %v277 = vrot.slane %v123, 1
    %v278 = vsel %vm167, %v277, %v276
    %v287 = vrot.slane %v125, 7
    %v288 = vsel %vm149, %v287, %v124
    %v289 = vrot.slane %v126, 6
    %v290 = vsel %vm152, %v289, %v288
    %v291 = vrot.slane %v127, 5
    %v292 = vsel %vm155, %v291, %v290
    %v293 = vrot.slane %v128, 4
    %v294 = vsel %vm158, %v293, %v292
    %v295 = vrot.slane %v129, 3
    %v296 = vsel %vm161, %v295, %v294
    %v297 = vrot.slane %v130, 2
    %v298 = vsel %vm164, %v297, %v296
    %v299 = vrot.slane %v131, 1
    %v300 = vsel %vm167, %v299, %v298
    %v309 = vrot.slane %v133, 7
    %v310 = vsel %vm149, %v309, %v132
    %v311 = vrot.slane %v134, 6
    %v312 = vsel %vm152, %v311, %v310
    %v313 = vrot.slane %v135, 5
    %v314 = vsel %vm155, %v313, %v312
    %v315 = vrot.slane %v136, 4
    %v316 = vsel %vm158, %v315, %v314
    %v317 = vrot.slane %v137, 3
    %v318 = vsel %vm161, %v317, %v316
    %v319 = vrot.slane %v138, 2
    %v320 = vsel %vm164, %v319, %v318
    %v321 = vrot.slane %v139, 1
    %v322 = vsel %vm167, %v321, %v320
    %v323 = vld [vmem:[#allocation2] sm:$0xff]
    %v324 = vld [vmem:[#allocation2 + $0x8] sm:$0xff]
    %v325 = vld [vmem:[#allocation2 + $0x10] sm:$0xff]
    %v326 = vld [vmem:[#allocation2 + $0x18] sm:$0xff]
    %v327 = vld [vmem:[#allocation2 + $0x20] sm:$0xff]
    %v328 = vld [vmem:[#allocation2 + $0x28] sm:$0xff]
    %v329 = vld [vmem:[#allocation2 + $0x30] sm:$0xff]
    %v330 = vld [vmem:[#allocation2 + $0x38] sm:$0xff]
    %v331 = vld [vmem:[%s4] sm:$0xf]
    %v333 = vlaneseq
    %v334 = vshrl.u32 %v333, 7
    %v335 = vsub.s32 0, %v334
    %v336 = vrot.slane %v331, %v335
    %v337 = vlaneseq
    %v338 = vshrl.u32 %v337, 7
    %v339 = vsub.s32 1, %v338
    %v340 = vrot.slane %v331, %v339
    %v341 = vlaneseq
    %v342 = vshrl.u32 %v341, 7
    %v343 = vsub.s32 2, %v342
    %v344 = vrot.slane %v331, %v343
    %v345 = vlaneseq
    %v346 = vshrl.u32 %v345, 7
    %v347 = vsub.s32 3, %v346
    %v348 = vrot.slane %v331, %v347
    %vm353 = vcmask 130048
    %v354 = vsel %vm353, %v168, 0
    %v356 = vsel %vm353, %v190, 0
    %v358 = vsel %vm353, %v212, 0
    %v360 = vsel %vm353, %v234, 0
    %v362 = vsel %vm353, %v256, 0
    %v364 = vsel %vm353, %v278, 0
    %v366 = vsel %vm353, %v300, 0
    %v368 = vsel %vm353, %v322, 0
    %370 = vmatprep.subr.mxu0 %v324
    %371 = vmatpush1.msra.mxu0 %v323
    %372 = vmatprep.subr.mxu0 %v328
    %373 = vmatpush1.msra.mxu0 %v327
    %374 = vmatprep.subr.mxu0 0.0
    %375 = vmatpush1.msra.mxu0 0.0
    %376 = vmatprep.subr.mxu0 0.0
    %377 = vmatpush1.msra.mxu0 0.0
    %378 = vmatprep.subr.mxu0 0.0
    %379 = vmatpush1.msra.mxu0 0.0
    %380 = vmatprep.subr.mxu0 0.0
    %381 = vmatpush1.msra.mxu0 0.0
    %382 = vmatprep.subr.mxu0 0.0
    %383 = vmatpush1.msra.mxu0 0.0
    %384 = vmatprep.subr.mxu0 0.0
    %385 = vmatpush1.msra.mxu0 0.0
    %386 = vmatprep.subr.mxu0 0.0
    %387 = vmatpush1.msra.mxu0 0.0
    %388 = vmatprep.subr.mxu0 0.0
    %389 = vmatpush1.msra.mxu0 0.0
    %390 = vmatprep.subr.mxu0 0.0
    %391 = vmatpush1.msra.mxu0 0.0
    %392 = vmatprep.subr.mxu0 0.0
    %393 = vmatpush1.msra.mxu0 0.0
    %394 = vmatprep.subr.mxu0 0.0
    %395 = vmatpush1.msra.mxu0 0.0
    %396 = vmatprep.subr.mxu0 0.0
    %397 = vmatpush1.msra.mxu0 0.0
    %398 = vmatprep.subr.mxu0 0.0
    %399 = vmatpush1.msra.mxu0 0.0
    %400 = vmatprep.subr.mxu0 0.0
    %401 = vmatpush1.msra.mxu0 0.0
    %402 = vmatprep.subr.mxu0 0.0
    %403 = vmatpush1.msra.mxu0 0.0
    %404 = vmatprep.subr.mxu0 0.0
    %405 = vmatpush1.msra.mxu0 0.0
    %406 = vmatprep.subr.mxu0 0.0
    %407 = vmatpush1.msra.mxu0 0.0
    %408 = vmatprep.subr.mxu0 0.0
    %409 = vmatpush1.msra.mxu0 0.0
    %410 = vmatprep.subr.mxu0 0.0
    %411 = vmatpush1.msra.mxu0 0.0
    %412 = vmatprep.subr.mxu0 0.0
    %413 = vmatpush1.msra.mxu0 0.0
    %414 = vmatprep.subr.mxu0 0.0
    %415 = vmatpush1.msra.mxu0 0.0
    %416 = vmatprep.subr.mxu0 0.0
    %417 = vmatpush1.msra.mxu0 0.0
    %418 = vmatprep.subr.mxu0 0.0
    %419 = vmatpush1.msra.mxu0 0.0
    %420 = vmatprep.subr.mxu0 0.0
    %421 = vmatpush1.msra.mxu0 0.0
    %422 = vmatprep.subr.mxu0 0.0
    %423 = vmatpush1.msra.mxu0 0.0
    %424 = vmatprep.subr.mxu0 0.0
    %425 = vmatpush1.msra.mxu0 0.0
    %426 = vmatprep.subr.mxu0 0.0
    %427 = vmatpush1.msra.mxu0 0.0
    %428 = vmatprep.subr.mxu0 0.0
    %429 = vmatpush1.msra.mxu0 0.0
    %430 = vmatprep.subr.mxu0 0.0
    %431 = vmatpush1.msra.mxu0 0.0
    %432 = vmatprep.subr.mxu0 0.0
    %433 = vmatpush1.msra.mxu0 0.0
    %434 = vmatprep.mubr.f32.mxu0 0.0
    %435 = vmatmul.mubr.f32.gmra.mrb[0].mxu0 %v354
    %v436 = vpop.f32.mrb[0].mxu0
    %v437 = vadd.f32 %v336, %v436
    %v438 = vpop.f32.mrb[0].mxu0
    %v439 = vadd.f32 %v340, %v438
    %440 = vmatprep.mubr.f32.mxu0 0.0
    %441 = vmatmul.mubr.f32.gmra.mrb[0].mxu0 %v356
    %v442 = vpop.f32.mrb[0].mxu0
    %v443 = vadd.f32 %v336, %v442
    %v444 = vpop.f32.mrb[0].mxu0
    %v445 = vadd.f32 %v340, %v444
    %446 = vmatprep.mubr.f32.mxu0 0.0
    %447 = vmatmul.mubr.f32.gmra.mrb[0].mxu0 %v358
    %v448 = vpop.f32.mrb[0].mxu0
    %v449 = vadd.f32 %v336, %v448
    %v450 = vpop.f32.mrb[0].mxu0
    %v451 = vadd.f32 %v340, %v450
    %452 = vmatprep.mubr.f32.mxu0 0.0
    %453 = vmatmul.mubr.f32.gmra.mrb[0].mxu0 %v360
    %v454 = vpop.f32.mrb[0].mxu0
    %v455 = vadd.f32 %v336, %v454
    %v456 = vpop.f32.mrb[0].mxu0
    %v457 = vadd.f32 %v340, %v456
    %458 = vmatprep.mubr.f32.mxu0 0.0
    %459 = vmatmul.mubr.f32.gmra.mrb[0].mxu0 %v362
    %v460 = vpop.f32.mrb[0].mxu0
    %v461 = vadd.f32 %v336, %v460
    %v462 = vpop.f32.mrb[0].mxu0
    %v463 = vadd.f32 %v340, %v462
    %464 = vmatprep.mubr.f32.mxu0 0.0
    %465 = vmatmul.mubr.f32.gmra.mrb[0].mxu0 %v364
    %v466 = vpop.f32.mrb[0].mxu0
    %v467 = vadd.f32 %v336, %v466
    %v468 = vpop.f32.mrb[0].mxu0
    %v469 = vadd.f32 %v340, %v468
    %470 = vmatprep.mubr.f32.mxu0 0.0
    %471 = vmatmul.mubr.f32.gmra.mrb[0].mxu0 %v366
    %v472 = vpop.f32.mrb[0].mxu0
    %v473 = vadd.f32 %v336, %v472
    %v474 = vpop.f32.mrb[0].mxu0
    %v475 = vadd.f32 %v340, %v474
    %476 = vmatprep.mubr.f32.mxu0 0.0
    %477 = vmatmul.mubr.f32.gmra.mrb[0].mxu0 %v368
    %v478 = vpop.f32.mrb[0].mxu0
    %v479 = vadd.f32 %v336, %v478
    %v480 = vpop.f32.mrb[0].mxu0
    %v481 = vadd.f32 %v340, %v480
    %482 = vdwg.mxu0
    %483 = vmatprep.subr.mxu0 %v326
    %484 = vmatpush1.msra.mxu0 %v325
    %485 = vmatprep.subr.mxu0 %v330
    %486 = vmatpush1.msra.mxu0 %v329
    %487 = vmatprep.subr.mxu0 0.0
    %488 = vmatpush1.msra.mxu0 0.0
    %489 = vmatprep.subr.mxu0 0.0
    %490 = vmatpush1.msra.mxu0 0.0
    %491 = vmatprep.subr.mxu0 0.0
    %492 = vmatpush1.msra.mxu0 0.0
    %493 = vmatprep.subr.mxu0 0.0
    %494 = vmatpush1.msra.mxu0 0.0
    %495 = vmatprep.subr.mxu0 0.0
    %496 = vmatpush1.msra.mxu0 0.0
    %497 = vmatprep.subr.mxu0 0.0
    %498 = vmatpush1.msra.mxu0 0.0
    %499 = vmatprep.subr.mxu0 0.0
    %500 = vmatpush1.msra.mxu0 0.0
    %501 = vmatprep.subr.mxu0 0.0
    %502 = vmatpush1.msra.mxu0 0.0
    %503 = vmatprep.subr.mxu0 0.0
    %504 = vmatpush1.msra.mxu0 0.0
    %505 = vmatprep.subr.mxu0 0.0
    %506 = vmatpush1.msra.mxu0 0.0
    %507 = vmatprep.subr.mxu0 0.0
    %508 = vmatpush1.msra.mxu0 0.0
    %509 = vmatprep.subr.mxu0 0.0
    %510 = vmatpush1.msra.mxu0 0.0
    %511 = vmatprep.subr.mxu0 0.0
    %512 = vmatpush1.msra.mxu0 0.0
    %513 = vmatprep.subr.mxu0 0.0
    %514 = vmatpush1.msra.mxu0 0.0
    %515 = vmatprep.subr.mxu0 0.0
    %516 = vmatpush1.msra.mxu0 0.0
    %517 = vmatprep.subr.mxu0 0.0
    %518 = vmatpush1.msra.mxu0 0.0
    %519 = vmatprep.subr.mxu0 0.0
    %520 = vmatpush1.msra.mxu0 0.0
    %521 = vmatprep.subr.mxu0 0.0
    %522 = vmatpush1.msra.mxu0 0.0
    %523 = vmatprep.subr.mxu0 0.0
    %524 = vmatpush1.msra.mxu0 0.0
    %525 = vmatprep.subr.mxu0 0.0
    %526 = vmatpush1.msra.mxu0 0.0
    %527 = vmatprep.subr.mxu0 0.0
    %528 = vmatpush1.msra.mxu0 0.0
    %529 = vmatprep.subr.mxu0 0.0
    %530 = vmatpush1.msra.mxu0 0.0
    %531 = vmatprep.subr.mxu0 0.0
    %532 = vmatpush1.msra.mxu0 0.0
    %533 = vmatprep.subr.mxu0 0.0
    %534 = vmatpush1.msra.mxu0 0.0
    %535 = vmatprep.subr.mxu0 0.0
    %536 = vmatpush1.msra.mxu0 0.0
    %537 = vmatprep.subr.mxu0 0.0
    %538 = vmatpush1.msra.mxu0 0.0
    %539 = vmatprep.subr.mxu0 0.0
    %540 = vmatpush1.msra.mxu0 0.0
    %541 = vmatprep.subr.mxu0 0.0
    %542 = vmatpush1.msra.mxu0 0.0
    %543 = vmatprep.subr.mxu0 0.0
    %544 = vmatpush1.msra.mxu0 0.0
    %545 = vmatprep.subr.mxu0 0.0
    %546 = vmatpush1.msra.mxu0 0.0
    %547 = vmatprep.mubr.f32.mxu0 0.0
    %548 = vmatmul.mubr.f32.gmra.mrb[0].mxu0 %v354
    %v549 = vpop.f32.mrb[0].mxu0
    %v550 = vadd.f32 %v344, %v549
    %v551 = vpop.f32.mrb[0].mxu0
    %v552 = vadd.f32 %v348, %v551
    %553 = vmatprep.mubr.f32.mxu0 0.0
    %554 = vmatmul.mubr.f32.gmra.mrb[0].mxu0 %v356
    %v555 = vpop.f32.mrb[0].mxu0
    %v556 = vadd.f32 %v344, %v555
    %v557 = vpop.f32.mrb[0].mxu0
    %v558 = vadd.f32 %v348, %v557
    %559 = vmatprep.mubr.f32.mxu0 0.0
    %560 = vmatmul.mubr.f32.gmra.mrb[0].mxu0 %v358
    %v561 = vpop.f32.mrb[0].mxu0
    %v562 = vadd.f32 %v344, %v561
    %v563 = vpop.f32.mrb[0].mxu0
    %v564 = vadd.f32 %v348, %v563
    %565 = vmatprep.mubr.f32.mxu0 0.0
    %566 = vmatmul.mubr.f32.gmra.mrb[0].mxu0 %v360
    %v567 = vpop.f32.mrb[0].mxu0
    %v568 = vadd.f32 %v344, %v567
    %v569 = vpop.f32.mrb[0].mxu0
    %v570 = vadd.f32 %v348, %v569
    %571 = vmatprep.mubr.f32.mxu0 0.0
    %572 = vmatmul.mubr.f32.gmra.mrb[0].mxu0 %v362
    %v573 = vpop.f32.mrb[0].mxu0
    %v574 = vadd.f32 %v344, %v573
    %v575 = vpop.f32.mrb[0].mxu0
    %v576 = vadd.f32 %v348, %v575
    %577 = vmatprep.mubr.f32.mxu0 0.0
    %578 = vmatmul.mubr.f32.gmra.mrb[0].mxu0 %v364
    %v579 = vpop.f32.mrb[0].mxu0
    %v580 = vadd.f32 %v344, %v579
    %v581 = vpop.f32.mrb[0].mxu0
    %v582 = vadd.f32 %v348, %v581
    %583 = vmatprep.mubr.f32.mxu0 0.0
    %584 = vmatmul.mubr.f32.gmra.mrb[0].mxu0 %v366
    %v585 = vpop.f32.mrb[0].mxu0
    %v586 = vadd.f32 %v344, %v585
    %v587 = vpop.f32.mrb[0].mxu0
    %v588 = vadd.f32 %v348, %v587
    %589 = vmatprep.mubr.f32.mxu0 0.0
    %590 = vmatmul.mubr.f32.gmra.mrb[0].mxu0 %v368
    %v591 = vpop.f32.mrb[0].mxu0
    %v592 = vadd.f32 %v344, %v591
    %v593 = vpop.f32.mrb[0].mxu0
    %v594 = vadd.f32 %v348, %v593
    %595 = vdwg.mxu0
    %v596 = vld [vmem:[%s1] sm:$0xff]
    %v597 = vlaneseq
    %v598 = vand.u32 %v597, 127
    %599 = vset.pattern.permute.xlu0 0
    %600 = vperm.xlu0 %599, %v596
    %v601 = vpop.permute.xlu0 %600
    %vm602 = vcmp.lt.s32.totalorder %v598, %v601
    %v603 = vld [vmem:[#allocation5] sm:$0xff]
    %v604 = vld [vmem:[#allocation5 + $0x8] sm:$0xff]
    %v605 = vld [vmem:[#allocation5 + $0x10] sm:$0xff]
    %v606 = vld [vmem:[#allocation5 + $0x18] sm:$0xff]
    %v607 = vld [vmem:[#allocation5 + $0x20] sm:$0xff]
    %v608 = vld [vmem:[#allocation5 + $0x28] sm:$0xff]
    %v609 = vld [vmem:[#allocation5 + $0x30] sm:$0xff]
    %v610 = vld [vmem:[#allocation5 + $0x38] sm:$0xff]
    %v611 = vld [vmem:[#allocation5 + $0x40] sm:$0xff]
    %v612 = vld [vmem:[#allocation5 + $0x48] sm:$0xff]
    %v613 = vld [vmem:[#allocation5 + $0x50] sm:$0xff]
    %v614 = vld [vmem:[#allocation5 + $0x58] sm:$0xff]
    %v615 = vld [vmem:[#allocation5 + $0x60] sm:$0xff]
    %v616 = vld [vmem:[#allocation5 + $0x68] sm:$0xff]
    %v617 = vld [vmem:[#allocation5 + $0x70] sm:$0xff]
    %v618 = vld [vmem:[#allocation5 + $0x78] sm:$0xff]
    %v619 = vld [vmem:[#allocation5 + $0x80] sm:$0xff]
    %v620 = vld [vmem:[#allocation5 + $0x88] sm:$0xff]
    %v621 = vld [vmem:[#allocation5 + $0x90] sm:$0xff]
    %v622 = vld [vmem:[#allocation5 + $0x98] sm:$0xff]
    %v623 = vld [vmem:[#allocation5 + $0xa0] sm:$0xff]
    %v624 = vld [vmem:[#allocation5 + $0xa8] sm:$0xff]
    %v625 = vld [vmem:[#allocation5 + $0xb0] sm:$0xff]
    %v626 = vld [vmem:[#allocation5 + $0xb8] sm:$0xff]
    %v627 = vld [vmem:[#allocation5 + $0xc0] sm:$0xff]
    %v628 = vld [vmem:[#allocation5 + $0xc8] sm:$0xff]
    %v629 = vld [vmem:[#allocation5 + $0xd0] sm:$0xff]
    %v630 = vld [vmem:[#allocation5 + $0xd8] sm:$0xff]
    %v631 = vld [vmem:[#allocation5 + $0xe0] sm:$0xff]
    %v632 = vld [vmem:[#allocation5 + $0xe8] sm:$0xff]
    %v633 = vld [vmem:[#allocation5 + $0xf0] sm:$0xff]
    %v634 = vld [vmem:[#allocation5 + $0xf8] sm:$0xff]
    %v635 = vld [vmem:[#allocation5 + $0x100] sm:$0xff]
    %v636 = vld [vmem:[#allocation5 + $0x108] sm:$0xff]
    %v637 = vld [vmem:[#allocation5 + $0x110] sm:$0xff]
    %v638 = vld [vmem:[#allocation5 + $0x118] sm:$0xff]
    %v639 = vld [vmem:[#allocation5 + $0x120] sm:$0xff]
    %v640 = vld [vmem:[#allocation5 + $0x128] sm:$0xff]
    %v641 = vld [vmem:[#allocation5 + $0x130] sm:$0xff]
    %v642 = vld [vmem:[#allocation5 + $0x138] sm:$0xff]
    %v643 = vld [vmem:[#allocation5 + $0x140] sm:$0xff]
    %v644 = vld [vmem:[#allocation5 + $0x148] sm:$0xff]
    %v645 = vld [vmem:[#allocation5 + $0x150] sm:$0xff]
    %v646 = vld [vmem:[#allocation5 + $0x158] sm:$0xff]
    %v647 = vld [vmem:[#allocation5 + $0x160] sm:$0xff]
    %v648 = vld [vmem:[#allocation5 + $0x168] sm:$0xff]
    %v649 = vld [vmem:[#allocation5 + $0x170] sm:$0xff]
    %v650 = vld [vmem:[#allocation5 + $0x178] sm:$0xff]
    %v651 = vld [vmem:[#allocation5 + $0x180] sm:$0xff]
    %v652 = vld [vmem:[#allocation5 + $0x188] sm:$0xff]
    %v653 = vld [vmem:[#allocation5 + $0x190] sm:$0xff]
    %v654 = vld [vmem:[#allocation5 + $0x198] sm:$0xff]
    %v655 = vld [vmem:[#allocation5 + $0x1a0] sm:$0xff]
    %v656 = vld [vmem:[#allocation5 + $0x1a8] sm:$0xff]
    %v657 = vld [vmem:[#allocation5 + $0x1b0] sm:$0xff]
    %v658 = vld [vmem:[#allocation5 + $0x1b8] sm:$0xff]
    %v659 = vld [vmem:[#allocation5 + $0x1c0] sm:$0xff]
    %v660 = vld [vmem:[#allocation5 + $0x1c8] sm:$0xff]
    %v661 = vld [vmem:[#allocation5 + $0x1d0] sm:$0xff]
    %v662 = vld [vmem:[#allocation5 + $0x1d8] sm:$0xff]
    %v663 = vld [vmem:[#allocation5 + $0x1e0] sm:$0xff]
    %v664 = vld [vmem:[#allocation5 + $0x1e8] sm:$0xff]
    %v665 = vld [vmem:[#allocation5 + $0x1f0] sm:$0xff]
    %v666 = vld [vmem:[#allocation5 + $0x1f8] sm:$0xff]
    %667 = vmatprep.subr.mxu0 %v604
    %668 = vmatpush1.msra.mxu0 %v603
    %669 = vmatprep.subr.mxu0 %v608
    %670 = vmatpush1.msra.mxu0 %v607
    %671 = vmatprep.subr.mxu0 %v612
    %672 = vmatpush1.msra.mxu0 %v611
    %673 = vmatprep.subr.mxu0 %v616
    %674 = vmatpush1.msra.mxu0 %v615
    %675 = vmatprep.subr.mxu0 %v620
    %676 = vmatpush1.msra.mxu0 %v619
    %677 = vmatprep.subr.mxu0 %v624
    %678 = vmatpush1.msra.mxu0 %v623
    %679 = vmatprep.subr.mxu0 %v628
    %680 = vmatpush1.msra.mxu0 %v627
    %681 = vmatprep.subr.mxu0 %v632
    %682 = vmatpush1.msra.mxu0 %v631
    %683 = vmatprep.subr.mxu0 %v636
    %684 = vmatpush1.msra.mxu0 %v635
    %685 = vmatprep.subr.mxu0 %v640
    %686 = vmatpush1.msra.mxu0 %v639
    %687 = vmatprep.subr.mxu0 %v644
    %688 = vmatpush1.msra.mxu0 %v643
    %689 = vmatprep.subr.mxu0 %v648
    %690 = vmatpush1.msra.mxu0 %v647
    %691 = vmatprep.subr.mxu0 %v652
    %692 = vmatpush1.msra.mxu0 %v651
    %693 = vmatprep.subr.mxu0 %v656
    %694 = vmatpush1.msra.mxu0 %v655
    %695 = vmatprep.subr.mxu0 %v660
    %696 = vmatpush1.msra.mxu0 %v659
    %697 = vmatprep.subr.mxu0 %v664
    %698 = vmatpush1.msra.mxu0 %v663
    %699 = vmatprep.subr.mxu0 0.0
    %700 = vmatpush1.msra.mxu0 0.0
    %701 = vmatprep.subr.mxu0 0.0
    %702 = vmatpush1.msra.mxu0 0.0
    %703 = vmatprep.subr.mxu0 0.0
    %704 = vmatpush1.msra.mxu0 0.0
    %705 = vmatprep.subr.mxu0 0.0
    %706 = vmatpush1.msra.mxu0 0.0
    %707 = vmatprep.subr.mxu0 0.0
    %708 = vmatpush1.msra.mxu0 0.0
    %709 = vmatprep.subr.mxu0 0.0
    %710 = vmatpush1.msra.mxu0 0.0
    %711 = vmatprep.subr.mxu0 0.0
    %712 = vmatpush1.msra.mxu0 0.0
    %713 = vmatprep.subr.mxu0 0.0
    %714 = vmatpush1.msra.mxu0 0.0
    %715 = vmatprep.subr.mxu0 0.0
    %716 = vmatpush1.msra.mxu0 0.0
    %717 = vmatprep.subr.mxu0 0.0
    %718 = vmatpush1.msra.mxu0 0.0
    %719 = vmatprep.subr.mxu0 0.0
    %720 = vmatpush1.msra.mxu0 0.0
    %721 = vmatprep.subr.mxu0 0.0
    %722 = vmatpush1.msra.mxu0 0.0
    %723 = vmatprep.subr.mxu0 0.0
    %724 = vmatpush1.msra.mxu0 0.0
    %725 = vmatprep.subr.mxu0 0.0
    %726 = vmatpush1.msra.mxu0 0.0
    %727 = vmatprep.subr.mxu0 0.0
    %728 = vmatpush1.msra.mxu0 0.0
    %729 = vmatprep.subr.mxu0 0.0
    %730 = vmatpush1.msra.mxu0 0.0
    %731 = vmatprep.mubr.f32.mxu0 0.0
    %732 = vmatmul.mubr.f32.gmra.mrb[0].mxu0 0.0
    %v733 = vpop.f32.mrb[0].mxu0
    %v734 = vadd.f32 0.0, %v733
    %v735 = vpop.f32.mrb[0].mxu0
    %v736 = vadd.f32 0.0, %v735
    %737 = vdwg.mxu0
    %738 = vmatprep.subr.mxu0 %v606
    %739 = vmatpush1.msra.mxu0 %v605
    %740 = vmatprep.subr.mxu0 %v610
    %741 = vmatpush1.msra.mxu0 %v609
    %742 = vmatprep.subr.mxu0 %v614
    %743 = vmatpush1.msra.mxu0 %v613
    %744 = vmatprep.subr.mxu0 %v618
    %745 = vmatpush1.msra.mxu0 %v617
    %746 = vmatprep.subr.mxu0 %v622
    %747 = vmatpush1.msra.mxu0 %v621
    %748 = vmatprep.subr.mxu0 %v626
    %749 = vmatpush1.msra.mxu0 %v625
    %750 = vmatprep.subr.mxu0 %v630
    %751 = vmatpush1.msra.mxu0 %v629
    %752 = vmatprep.subr.mxu0 %v634
    %753 = vmatpush1.msra.mxu0 %v633
    %754 = vmatprep.subr.mxu0 %v638
    %755 = vmatpush1.msra.mxu0 %v637
    %756 = vmatprep.subr.mxu0 %v642
    %757 = vmatpush1.msra.mxu0 %v641
    %758 = vmatprep.subr.mxu0 %v646
    %759 = vmatpush1.msra.mxu0 %v645
    %760 = vmatprep.subr.mxu0 %v650
    %761 = vmatpush1.msra.mxu0 %v649
    %762 = vmatprep.subr.mxu0 %v654
    %763 = vmatpush1.msra.mxu0 %v653
    %764 = vmatprep.subr.mxu0 %v658
    %765 = vmatpush1.msra.mxu0 %v657
    %766 = vmatprep.subr.mxu0 %v662
    %767 = vmatpush1.msra.mxu0 %v661
    %768 = vmatprep.subr.mxu0 %v666
    %769 = vmatpush1.msra.mxu0 %v665
    %770 = vmatprep.subr.mxu0 0.0
    %771 = vmatpush1.msra.mxu0 0.0
    %772 = vmatprep.subr.mxu0 0.0
    %773 = vmatpush1.msra.mxu0 0.0
    %774 = vmatprep.subr.mxu0 0.0
    %775 = vmatpush1.msra.mxu0 0.0
    %776 = vmatprep.subr.mxu0 0.0
    %777 = vmatpush1.msra.mxu0 0.0
    %778 = vmatprep.subr.mxu0 0.0
    %779 = vmatpush1.msra.mxu0 0.0
    %780 = vmatprep.subr.mxu0 0.0
    %781 = vmatpush1.msra.mxu0 0.0
    %782 = vmatprep.subr.mxu0 0.0
    %783 = vmatpush1.msra.mxu0 0.0
    %784 = vmatprep.subr.mxu0 0.0
    %785 = vmatpush1.msra.mxu0 0.0
    %786 = vmatprep.subr.mxu0 0.0
    %787 = vmatpush1.msra.mxu0 0.0
    %788 = vmatprep.subr.mxu0 0.0
    %789 = vmatpush1.msra.mxu0 0.0
    %790 = vmatprep.subr.mxu0 0.0
    %791 = vmatpush1.msra.mxu0 0.0
    %792 = vmatprep.subr.mxu0 0.0
    %793 = vmatpush1.msra.mxu0 0.0
    %794 = vmatprep.subr.mxu0 0.0
    %795 = vmatpush1.msra.mxu0 0.0
    %796 = vmatprep.subr.mxu0 0.0
    %797 = vmatpush1.msra.mxu0 0.0
    %798 = vmatprep.subr.mxu0 0.0
    %799 = vmatpush1.msra.mxu0 0.0
    %800 = vmatprep.subr.mxu0 0.0
    %801 = vmatpush1.msra.mxu0 0.0
    %802 = vmatprep.mubr.f32.mxu0 0.0
    %803 = vmatmul.mubr.f32.gmra.mrb[0].mxu0 0.0
    %v804 = vpop.f32.mrb[0].mxu0
    %v805 = vadd.f32 0.0, %v804
    %v806 = vpop.f32.mrb[0].mxu0
    %v807 = vadd.f32 0.0, %v806
    %808 = vdwg.mxu0
    %v809 = vadd.f32 %v437, %v734
    %v810 = vadd.f32 %v439, %v736
    %v811 = vadd.f32 %v550, %v805
    %v812 = vadd.f32 %v552, %v807
    %v813 = vxor.u32 %v809, 2147483648
    %v814 = vmul.f32 %v813, 1.442695
    %v815 = vpow.pop %v814
    %v816 = vadd.f32 %v815, 1.0
    %v817 = vrcp.pop %v816
    %v818 = vmul.f32 1.0, %v817
    %v819 = vxor.u32 %v810, 2147483648
    %v820 = vmul.f32 %v819, 1.442695
    %v821 = vpow.pop %v820
    %v822 = vadd.f32 %v821, 1.0
    %v823 = vrcp.pop %v822
    %v824 = vmul.f32 1.0, %v823
    %v825 = vtanh.pop %v811
    %v826 = vxor.u32 %v812, 2147483648
    %v827 = vmul.f32 %v826, 1.442695
    %v828 = vpow.pop %v827
    %v829 = vadd.f32 %v828, 1.0
    %v830 = vrcp.pop %v829
    %v831 = vmul.f32 1.0, %v830
    %v832 = vmul.f32 %v824, 0.0
    %v833 = vmul.f32 %v818, %v825
    %v834 = vadd.f32 %v832, %v833
    %v835 = vtanh.pop %v834
    %v836 = vmul.f32 %v831, %v835
    %v837 = vsel %vm602, 1, 0
    %838 = vset.pattern.permute.xlu0 0
    %839 = vperm.xlu0 %838, %v837
    %v840 = vpop.permute.xlu0 %839
    %vm841 = vcmp.eq.s32.totalorder %v840, 1
    %v842 = vsel %vm841, %v834, 0.0
    %v843 = vsel %vm841, %v836, 0.0
    %844 = vmatprep.subr.mxu0 %v604
    %845 = vmatpush1.msra.mxu0 %v603
    %846 = vmatprep.subr.mxu0 %v608
    %847 = vmatpush1.msra.mxu0 %v607
    %848 = vmatprep.subr.mxu0 %v612
    %849 = vmatpush1.msra.mxu0 %v611
    %850 = vmatprep.subr.mxu0 %v616
    %851 = vmatpush1.msra.mxu0 %v615
    %852 = vmatprep.subr.mxu0 %v620
    %853 = vmatpush1.msra.mxu0 %v619
    %854 = vmatprep.subr.mxu0 %v624
    %855 = vmatpush1.msra.mxu0 %v623
    %856 = vmatprep.subr.mxu0 %v628
    %857 = vmatpush1.msra.mxu0 %v627
    %858 = vmatprep.subr.mxu0 %v632
    %859 = vmatpush1.msra.mxu0 %v631
    %860 = vmatprep.subr.mxu0 %v636
    %861 = vmatpush1.msra.mxu0 %v635
    %862 = vmatprep.subr.mxu0 %v640
    %863 = vmatpush1.msra.mxu0 %v639
    %864 = vmatprep.subr.mxu0 %v644
    %865 = vmatpush1.msra.mxu0 %v643
    %866 = vmatprep.subr.mxu0 %v648
    %867 = vmatpush1.msra.mxu0 %v647
    %868 = vmatprep.subr.mxu0 %v652
    %869 = vmatpush1.msra.mxu0 %v651
    %870 = vmatprep.subr.mxu0 %v656
    %871 = vmatpush1.msra.mxu0 %v655
    %872 = vmatprep.subr.mxu0 %v660
    %873 = vmatpush1.msra.mxu0 %v659
    %874 = vmatprep.subr.mxu0 %v664
    %875 = vmatpush1.msra.mxu0 %v663
    %876 = vmatprep.subr.mxu0 0.0
    %877 = vmatpush1.msra.mxu0 0.0
    %878 = vmatprep.subr.mxu0 0.0
    %879 = vmatpush1.msra.mxu0 0.0
    %880 = vmatprep.subr.mxu0 0.0
    %881 = vmatpush1.msra.mxu0 0.0
    %882 = vmatprep.subr.mxu0 0.0
    %883 = vmatpush1.msra.mxu0 0.0
    %884 = vmatprep.subr.mxu0 0.0
    %885 = vmatpush1.msra.mxu0 0.0
    %886 = vmatprep.subr.mxu0 0.0
    %887 = vmatpush1.msra.mxu0 0.0
    %888 = vmatprep.subr.mxu0 0.0
    %889 = vmatpush1.msra.mxu0 0.0
    %890 = vmatprep.subr.mxu0 0.0
    %891 = vmatpush1.msra.mxu0 0.0
    %892 = vmatprep.subr.mxu0 0.0
    %893 = vmatpush1.msra.mxu0 0.0
    %894 = vmatprep.subr.mxu0 0.0
    %895 = vmatpush1.msra.mxu0 0.0
    %896 = vmatprep.subr.mxu0 0.0
    %897 = vmatpush1.msra.mxu0 0.0
    %898 = vmatprep.subr.mxu0 0.0
    %899 = vmatpush1.msra.mxu0 0.0
    %900 = vmatprep.subr.mxu0 0.0
    %901 = vmatpush1.msra.mxu0 0.0
    %902 = vmatprep.subr.mxu0 0.0
    %903 = vmatpush1.msra.mxu0 0.0
    %904 = vmatprep.subr.mxu0 0.0
    %905 = vmatpush1.msra.mxu0 0.0
    %906 = vmatprep.subr.mxu0 0.0
    %907 = vmatpush1.msra.mxu0 0.0
    %908 = vmatprep.mubr.f32.mxu0 0.0
    %909 = vmatmul.mubr.f32.gmra.mrb[0].mxu0 %v843
    %v910 = vpop.f32.mrb[0].mxu0
    %v911 = vadd.f32 0.0, %v910
    %v912 = vpop.f32.mrb[0].mxu0
    %v913 = vadd.f32 0.0, %v912
    %914 = vdwg.mxu0
    %915 = vmatprep.subr.mxu0 %v606
    %916 = vmatpush1.msra.mxu0 %v605
    %917 = vmatprep.subr.mxu0 %v610
    %918 = vmatpush1.msra.mxu0 %v609
    %919 = vmatprep.subr.mxu0 %v614
    %920 = vmatpush1.msra.mxu0 %v613
    %921 = vmatprep.subr.mxu0 %v618
    %922 = vmatpush1.msra.mxu0 %v617
    %923 = vmatprep.subr.mxu0 %v622
    %924 = vmatpush1.msra.mxu0 %v621
    %925 = vmatprep.subr.mxu0 %v626
    %926 = vmatpush1.msra.mxu0 %v625
    %927 = vmatprep.subr.mxu0 %v630
    %928 = vmatpush1.msra.mxu0 %v629
    %929 = vmatprep.subr.mxu0 %v634
    %930 = vmatpush1.msra.mxu0 %v633
    %931 = vmatprep.subr.mxu0 %v638
    %932 = vmatpush1.msra.mxu0 %v637
    %933 = vmatprep.subr.mxu0 %v642
    %934 = vmatpush1.msra.mxu0 %v641
    %935 = vmatprep.subr.mxu0 %v646
    %936 = vmatpush1.msra.mxu0 %v645
    %937 = vmatprep.subr.mxu0 %v650
    %938 = vmatpush1.msra.mxu0 %v649
    %939 = vmatprep.subr.mxu0 %v654
    %940 = vmatpush1.msra.mxu0 %v653
    %941 = vmatprep.subr.mxu0 %v658
    %942 = vmatpush1.msra.mxu0 %v657
    %943 = vmatprep.subr.mxu0 %v662
    %944 = vmatpush1.msra.mxu0 %v661
    %945 = vmatprep.subr.mxu0 %v666
    %946 = vmatpush1.msra.mxu0 %v665
    %947 = vmatprep.subr.mxu0 0.0
    %948 = vmatpush1.msra.mxu0 0.0
    %949 = vmatprep.subr.mxu0 0.0
    %950 = vmatpush1.msra.mxu0 0.0
    %951 = vmatprep.subr.mxu0 0.0
    %952 = vmatpush1.msra.mxu0 0.0
    %953 = vmatprep.subr.mxu0 0.0
    %954 = vmatpush1.msra.mxu0 0.0
    %955 = vmatprep.subr.mxu0 0.0
    %956 = vmatpush1.msra.mxu0 0.0
    %957 = vmatprep.subr.mxu0 0.0
    %958 = vmatpush1.msra.mxu0 0.0
    %959 = vmatprep.subr.mxu0 0.0
    %960 = vmatpush1.msra.mxu0 0.0
    %961 = vmatprep.subr.mxu0 0.0
    %962 = vmatpush1.msra.mxu0 0.0
    %963 = vmatprep.subr.mxu0 0.0
    %964 = vmatpush1.msra.mxu0 0.0
    %965 = vmatprep.subr.mxu0 0.0
    %966 = vmatpush1.msra.mxu0 0.0
    %967 = vmatprep.subr.mxu0 0.0
    %968 = vmatpush1.msra.mxu0 0.0
    %969 = vmatprep.subr.mxu0 0.0
    %970 = vmatpush1.msra.mxu0 0.0
    %971 = vmatprep.subr.mxu0 0.0
    %972 = vmatpush1.msra.mxu0 0.0
    %973 = vmatprep.subr.mxu0 0.0
    %974 = vmatpush1.msra.mxu0 0.0
    %975 = vmatprep.subr.mxu0 0.0
    %976 = vmatpush1.msra.mxu0 0.0
    %977 = vmatprep.subr.mxu0 0.0
    %978 = vmatpush1.msra.mxu0 0.0
    %979 = vmatprep.mubr.f32.mxu0 0.0
    %980 = vmatmul.mubr.f32.gmra.mrb[0].mxu0 %v843
    %v981 = vpop.f32.mrb[0].mxu0
    %v982 = vadd.f32 0.0, %v981
    %v983 = vpop.f32.mrb[0].mxu0
    %v984 = vadd.f32 0.0, %v983
    %985 = vdwg.mxu0
    %v986 = vadd.f32 %v443, %v911
    %v987 = vadd.f32 %v445, %v913
    %v988 = vadd.f32 %v556, %v982
    %v989 = vadd.f32 %v558, %v984
    %v990 = vxor.u32 %v986, 2147483648
    %v991 = vmul.f32 %v990, 1.442695
    %v992 = vpow.pop %v991
    %v993 = vadd.f32 %v992, 1.0
    %v994 = vrcp.pop %v993
    %v995 = vmul.f32 1.0, %v994
    %v996 = vxor.u32 %v987, 2147483648
    %v997 = vmul.f32 %v996, 1.442695
    %v998 = vpow.pop %v997
    %v999 = vadd.f32 %v998, 1.0
    %v1000 = vrcp.pop %v999
    %v1001 = vmul.f32 1.0, %v1000
    %v1002 = vtanh.pop %v988
    %v1003 = vxor.u32 %v989, 2147483648
    %v1004 = vmul.f32 %v1003, 1.442695
    %v1005 = vpow.pop %v1004
    %v1006 = vadd.f32 %v1005, 1.0
    %v1007 = vrcp.pop %v1006
    %v1008 = vmul.f32 1.0, %v1007
    %v1009 = vmul.f32 %v1001, %v842
    %v1010 = vmul.f32 %v995, %v1002
    %v1011 = vadd.f32 %v1009, %v1010
    %v1012 = vtanh.pop %v1011
    %v1013 = vmul.f32 %v1008, %v1012
    %1014 = vset.pattern.permute.xlu0 1
    %1015 = vperm.xlu0 %1014, %v837
    %v1016 = vpop.permute.xlu0 %1015
    %vm1017 = vcmp.eq.s32.totalorder %v1016, 1
    %v1018 = vsel %vm1017, %v1011, %v842
    %v1019 = vsel %vm1017, %v1013, %v843
    %v1020 = vsel %vm1017, %v1013, 0.0
    %1021 = vmatprep.subr.mxu0 %v604
    %1022 = vmatpush1.msra.mxu0 %v603
    %1023 = vmatprep.subr.mxu0 %v608
    %1024 = vmatpush1.msra.mxu0 %v607
    %1025 = vmatprep.subr.mxu0 %v612
    %1026 = vmatpush1.msra.mxu0 %v611
    %1027 = vmatprep.subr.mxu0 %v616
    %1028 = vmatpush1.msra.mxu0 %v615
    %1029 = vmatprep.subr.mxu0 %v620
    %1030 = vmatpush1.msra.mxu0 %v619
    %1031 = vmatprep.subr.mxu0 %v624
    %1032 = vmatpush1.msra.mxu0 %v623
    %1033 = vmatprep.subr.mxu0 %v628
    %1034 = vmatpush1.msra.mxu0 %v627
    %1035 = vmatprep.subr.mxu0 %v632
    %1036 = vmatpush1.msra.mxu0 %v631
    %1037 = vmatprep.subr.mxu0 %v636
    %1038 = vmatpush1.msra.mxu0 %v635
    %1039 = vmatprep.subr.mxu0 %v640
    %1040 = vmatpush1.msra.mxu0 %v639
    %1041 = vmatprep.subr.mxu0 %v644
    %1042 = vmatpush1.msra.mxu0 %v643
    %1043 = vmatprep.subr.mxu0 %v648
    %1044 = vmatpush1.msra.mxu0 %v647
    %1045 = vmatprep.subr.mxu0 %v652
    %1046 = vmatpush1.msra.mxu0 %v651
    %1047 = vmatprep.subr.mxu0 %v656
    %1048 = vmatpush1.msra.mxu0 %v655
    %1049 = vmatprep.subr.mxu0 %v660
    %1050 = vmatpush1.msra.mxu0 %v659
    %1051 = vmatprep.subr.mxu0 %v664
    %1052 = vmatpush1.msra.mxu0 %v663
    %1053 = vmatprep.subr.mxu0 0.0
    %1054 = vmatpush1.msra.mxu0 0.0
    %1055 = vmatprep.subr.mxu0 0.0
    %1056 = vmatpush1.msra.mxu0 0.0
    %1057 = vmatprep.subr.mxu0 0.0
    %1058 = vmatpush1.msra.mxu0 0.0
    %1059 = vmatprep.subr.mxu0 0.0
    %1060 = vmatpush1.msra.mxu0 0.0
    %1061 = vmatprep.subr.mxu0 0.0
    %1062 = vmatpush1.msra.mxu0 0.0
    %1063 = vmatprep.subr.mxu0 0.0
    %1064 = vmatpush1.msra.mxu0 0.0
    %1065 = vmatprep.subr.mxu0 0.0
    %1066 = vmatpush1.msra.mxu0 0.0
    %1067 = vmatprep.subr.mxu0 0.0
    %1068 = vmatpush1.msra.mxu0 0.0
    %1069 = vmatprep.subr.mxu0 0.0
    %1070 = vmatpush1.msra.mxu0 0.0
    %1071 = vmatprep.subr.mxu0 0.0
    %1072 = vmatpush1.msra.mxu0 0.0
    %1073 = vmatprep.subr.mxu0 0.0
    %1074 = vmatpush1.msra.mxu0 0.0
    %1075 = vmatprep.subr.mxu0 0.0
    %1076 = vmatpush1.msra.mxu0 0.0
    %1077 = vmatprep.subr.mxu0 0.0
    %1078 = vmatpush1.msra.mxu0 0.0
    %1079 = vmatprep.subr.mxu0 0.0
    %1080 = vmatpush1.msra.mxu0 0.0
    %1081 = vmatprep.subr.mxu0 0.0
    %1082 = vmatpush1.msra.mxu0 0.0
    %1083 = vmatprep.subr.mxu0 0.0
    %1084 = vmatpush1.msra.mxu0 0.0
    %1085 = vmatprep.mubr.f32.mxu0 0.0
    %1086 = vmatmul.mubr.f32.gmra.mrb[0].mxu0 %v1019
    %v1087 = vpop.f32.mrb[0].mxu0
    %v1088 = vadd.f32 0.0, %v1087
    %v1089 = vpop.f32.mrb[0].mxu0
    %v1090 = vadd.f32 0.0, %v1089
    %1091 = vdwg.mxu0
    %1092 = vmatprep.subr.mxu0 %v606
    %1093 = vmatpush1.msra.mxu0 %v605
    %1094 = vmatprep.subr.mxu0 %v610
    %1095 = vmatpush1.msra.mxu0 %v609
    %1096 = vmatprep.subr.mxu0 %v614
    %1097 = vmatpush1.msra.mxu0 %v613
    %1098 = vmatprep.subr.mxu0 %v618
    %1099 = vmatpush1.msra.mxu0 %v617
    %1100 = vmatprep.subr.mxu0 %v622
    %1101 = vmatpush1.msra.mxu0 %v621
    %1102 = vmatprep.subr.mxu0 %v626
    %1103 = vmatpush1.msra.mxu0 %v625
    %1104 = vmatprep.subr.mxu0 %v630
    %1105 = vmatpush1.msra.mxu0 %v629
    %1106 = vmatprep.subr.mxu0 %v634
    %1107 = vmatpush1.msra.mxu0 %v633
    %1108 = vmatprep.subr.mxu0 %v638
    %1109 = vmatpush1.msra.mxu0 %v637
    %1110 = vmatprep.subr.mxu0 %v642
    %1111 = vmatpush1.msra.mxu0 %v641
    %1112 = vmatprep.subr.mxu0 %v646
    %1113 = vmatpush1.msra.mxu0 %v645
    %1114 = vmatprep.subr.mxu0 %v650
    %1115 = vmatpush1.msra.mxu0 %v649
    %1116 = vmatprep.subr.mxu0 %v654
    %1117 = vmatpush1.msra.mxu0 %v653
    %1118 = vmatprep.subr.mxu0 %v658
    %1119 = vmatpush1.msra.mxu0 %v657
    %1120 = vmatprep.subr.mxu0 %v662
    %1121 = vmatpush1.msra.mxu0 %v661
    %1122 = vmatprep.subr.mxu0 %v666
    %1123 = vmatpush1.msra.mxu0 %v665
    %1124 = vmatprep.subr.mxu0 0.0
    %1125 = vmatpush1.msra.mxu0 0.0
    %1126 = vmatprep.subr.mxu0 0.0
    %1127 = vmatpush1.msra.mxu0 0.0
    %1128 = vmatprep.subr.mxu0 0.0
    %1129 = vmatpush1.msra.mxu0 0.0
    %1130 = vmatprep.subr.mxu0 0.0
    %1131 = vmatpush1.msra.mxu0 0.0
    %1132 = vmatprep.subr.mxu0 0.0
    %1133 = vmatpush1.msra.mxu0 0.0
    %1134 = vmatprep.subr.mxu0 0.0
    %1135 = vmatpush1.msra.mxu0 0.0
    %1136 = vmatprep.subr.mxu0 0.0
    %1137 = vmatpush1.msra.mxu0 0.0
    %1138 = vmatprep.subr.mxu0 0.0
    %1139 = vmatpush1.msra.mxu0 0.0
    %1140 = vmatprep.subr.mxu0 0.0
    %1141 = vmatpush1.msra.mxu0 0.0
    %1142 = vmatprep.subr.mxu0 0.0
    %1143 = vmatpush1.msra.mxu0 0.0
    %1144 = vmatprep.subr.mxu0 0.0
    %1145 = vmatpush1.msra.mxu0 0.0
    %1146 = vmatprep.subr.mxu0 0.0
    %1147 = vmatpush1.msra.mxu0 0.0
    %1148 = vmatprep.subr.mxu0 0.0
    %1149 = vmatpush1.msra.mxu0 0.0
    %1150 = vmatprep.subr.mxu0 0.0
    %1151 = vmatpush1.msra.mxu0 0.0
    %1152 = vmatprep.subr.mxu0 0.0
    %1153 = vmatpush1.msra.mxu0 0.0
    %1154 = vmatprep.subr.mxu0 0.0
    %1155 = vmatpush1.msra.mxu0 0.0
    %1156 = vmatprep.mubr.f32.mxu0 0.0
    %1157 = vmatmul.mubr.f32.gmra.mrb[0].mxu0 %v1019
    %v1158 = vpop.f32.mrb[0].mxu0
    %v1159 = vadd.f32 0.0, %v1158
    %v1160 = vpop.f32.mrb[0].mxu0
    %v1161 = vadd.f32 0.0, %v1160
    %1162 = vdwg.mxu0
    %v1163 = vadd.f32 %v449, %v1088
    %v1164 = vadd.f32 %v451, %v1090
    %v1165 = vadd.f32 %v562, %v1159
    %v1166 = vadd.f32 %v564, %v1161
    %v1167 = vxor.u32 %v1163, 2147483648
    %v1168 = vmul.f32 %v1167, 1.442695
    %v1169 = vpow.pop %v1168
    %v1170 = vadd.f32 %v1169, 1.0
    %v1171 = vrcp.pop %v1170
    %v1172 = vmul.f32 1.0, %v1171
    %v1173 = vxor.u32 %v1164, 2147483648
    %v1174 = vmul.f32 %v1173, 1.442695
    %v1175 = vpow.pop %v1174
    %v1176 = vadd.f32 %v1175, 1.0
    %v1177 = vrcp.pop %v1176
    %v1178 = vmul.f32 1.0, %v1177
    %v1179 = vtanh.pop %v1165
    %v1180 = vxor.u32 %v1166, 2147483648
    %v1181 = vmul.f32 %v1180, 1.442695
    %v1182 = vpow.pop %v1181
    %v1183 = vadd.f32 %v1182, 1.0
    %v1184 = vrcp.pop %v1183
    %v1185 = vmul.f32 1.0, %v1184
    %v1186 = vmul.f32 %v1178, %v1018
    %v1187 = vmul.f32 %v1172, %v1179
    %v1188 = vadd.f32 %v1186, %v1187
    %v1189 = vtanh.pop %v1188
    %v1190 = vmul.f32 %v1185, %v1189
    %1191 = vset.pattern.permute.xlu0 2
    %1192 = vperm.xlu0 %1191, %v837
    %v1193 = vpop.permute.xlu0 %1192
    %vm1194 = vcmp.eq.s32.totalorder %v1193, 1
    %v1195 = vsel %vm1194, %v1188, %v1018
    %v1196 = vsel %vm1194, %v1190, %v1019
    %v1197 = vsel %vm1194, %v1190, 0.0
    %1198 = vmatprep.subr.mxu0 %v604
    %1199 = vmatpush1.msra.mxu0 %v603
    %1200 = vmatprep.subr.mxu0 %v608
    %1201 = vmatpush1.msra.mxu0 %v607
    %1202 = vmatprep.subr.mxu0 %v612
    %1203 = vmatpush1.msra.mxu0 %v611
    %1204 = vmatprep.subr.mxu0 %v616
    %1205 = vmatpush1.msra.mxu0 %v615
    %1206 = vmatprep.subr.mxu0 %v620
    %1207 = vmatpush1.msra.mxu0 %v619
    %1208 = vmatprep.subr.mxu0 %v624
    %1209 = vmatpush1.msra.mxu0 %v623
    %1210 = vmatprep.subr.mxu0 %v628
    %1211 = vmatpush1.msra.mxu0 %v627
    %1212 = vmatprep.subr.mxu0 %v632
    %1213 = vmatpush1.msra.mxu0 %v631
    %1214 = vmatprep.subr.mxu0 %v636
    %1215 = vmatpush1.msra.mxu0 %v635
    %1216 = vmatprep.subr.mxu0 %v640
    %1217 = vmatpush1.msra.mxu0 %v639
    %1218 = vmatprep.subr.mxu0 %v644
    %1219 = vmatpush1.msra.mxu0 %v643
    %1220 = vmatprep.subr.mxu0 %v648
    %1221 = vmatpush1.msra.mxu0 %v647
    %1222 = vmatprep.subr.mxu0 %v652
    %1223 = vmatpush1.msra.mxu0 %v651
    %1224 = vmatprep.subr.mxu0 %v656
    %1225 = vmatpush1.msra.mxu0 %v655
    %1226 = vmatprep.subr.mxu0 %v660
    %1227 = vmatpush1.msra.mxu0 %v659
    %1228 = vmatprep.subr.mxu0 %v664
    %1229 = vmatpush1.msra.mxu0 %v663
    %1230 = vmatprep.subr.mxu0 0.0
    %1231 = vmatpush1.msra.mxu0 0.0
    %1232 = vmatprep.subr.mxu0 0.0
    %1233 = vmatpush1.msra.mxu0 0.0
    %1234 = vmatprep.subr.mxu0 0.0
    %1235 = vmatpush1.msra.mxu0 0.0
    %1236 = vmatprep.subr.mxu0 0.0
    %1237 = vmatpush1.msra.mxu0 0.0
    %1238 = vmatprep.subr.mxu0 0.0
    %1239 = vmatpush1.msra.mxu0 0.0
    %1240 = vmatprep.subr.mxu0 0.0
    %1241 = vmatpush1.msra.mxu0 0.0
    %1242 = vmatprep.subr.mxu0 0.0
    %1243 = vmatpush1.msra.mxu0 0.0
    %1244 = vmatprep.subr.mxu0 0.0
    %1245 = vmatpush1.msra.mxu0 0.0
    %1246 = vmatprep.subr.mxu0 0.0
    %1247 = vmatpush1.msra.mxu0 0.0
    %1248 = vmatprep.subr.mxu0 0.0
    %1249 = vmatpush1.msra.mxu0 0.0
    %1250 = vmatprep.subr.mxu0 0.0
    %1251 = vmatpush1.msra.mxu0 0.0
    %1252 = vmatprep.subr.mxu0 0.0
    %1253 = vmatpush1.msra.mxu0 0.0
    %1254 = vmatprep.subr.mxu0 0.0
    %1255 = vmatpush1.msra.mxu0 0.0
    %1256 = vmatprep.subr.mxu0 0.0
    %1257 = vmatpush1.msra.mxu0 0.0
    %1258 = vmatprep.subr.mxu0 0.0
    %1259 = vmatpush1.msra.mxu0 0.0
    %1260 = vmatprep.subr.mxu0 0.0
    %1261 = vmatpush1.msra.mxu0 0.0
    %1262 = vmatprep.mubr.f32.mxu0 0.0
    %1263 = vmatmul.mubr.f32.gmra.mrb[0].mxu0 %v1196
    %v1264 = vpop.f32.mrb[0].mxu0
    %v1265 = vadd.f32 0.0, %v1264
    %v1266 = vpop.f32.mrb[0].mxu0
    %v1267 = vadd.f32 0.0, %v1266
    %1268 = vdwg.mxu0
    %1269 = vmatprep.subr.mxu0 %v606
    %1270 = vmatpush1.msra.mxu0 %v605
    %1271 = vmatprep.subr.mxu0 %v610
    %1272 = vmatpush1.msra.mxu0 %v609
    %1273 = vmatprep.subr.mxu0 %v614
    %1274 = vmatpush1.msra.mxu0 %v613
    %1275 = vmatprep.subr.mxu0 %v618
    %1276 = vmatpush1.msra.mxu0 %v617
    %1277 = vmatprep.subr.mxu0 %v622
    %1278 = vmatpush1.msra.mxu0 %v621
    %1279 = vmatprep.subr.mxu0 %v626
    %1280 = vmatpush1.msra.mxu0 %v625
    %1281 = vmatprep.subr.mxu0 %v630
    %1282 = vmatpush1.msra.mxu0 %v629
    %1283 = vmatprep.subr.mxu0 %v634
    %1284 = vmatpush1.msra.mxu0 %v633
    %1285 = vmatprep.subr.mxu0 %v638
    %1286 = vmatpush1.msra.mxu0 %v637
    %1287 = vmatprep.subr.mxu0 %v642
    %1288 = vmatpush1.msra.mxu0 %v641
    %1289 = vmatprep.subr.mxu0 %v646
    %1290 = vmatpush1.msra.mxu0 %v645
    %1291 = vmatprep.subr.mxu0 %v650
    %1292 = vmatpush1.msra.mxu0 %v649
    %1293 = vmatprep.subr.mxu0 %v654
    %1294 = vmatpush1.msra.mxu0 %v653
    %1295 = vmatprep.subr.mxu0 %v658
    %1296 = vmatpush1.msra.mxu0 %v657
    %1297 = vmatprep.subr.mxu0 %v662
    %1298 = vmatpush1.msra.mxu0 %v661
    %1299 = vmatprep.subr.mxu0 %v666
    %1300 = vmatpush1.msra.mxu0 %v665
    %1301 = vmatprep.subr.mxu0 0.0
    %1302 = vmatpush1.msra.mxu0 0.0
    %1303 = vmatprep.subr.mxu0 0.0
    %1304 = vmatpush1.msra.mxu0 0.0
    %1305 = vmatprep.subr.mxu0 0.0
    %1306 = vmatpush1.msra.mxu0 0.0
    %1307 = vmatprep.subr.mxu0 0.0
    %1308 = vmatpush1.msra.mxu0 0.0
    %1309 = vmatprep.subr.mxu0 0.0
    %1310 = vmatpush1.msra.mxu0 0.0
    %1311 = vmatprep.subr.mxu0 0.0
    %1312 = vmatpush1.msra.mxu0 0.0
    %1313 = vmatprep.subr.mxu0 0.0
    %1314 = vmatpush1.msra.mxu0 0.0
    %1315 = vmatprep.subr.mxu0 0.0
    %1316 = vmatpush1.msra.mxu0 0.0
    %1317 = vmatprep.subr.mxu0 0.0
    %1318 = vmatpush1.msra.mxu0 0.0
    %1319 = vmatprep.subr.mxu0 0.0
    %1320 = vmatpush1.msra.mxu0 0.0
    %1321 = vmatprep.subr.mxu0 0.0
    %1322 = vmatpush1.msra.mxu0 0.0
    %1323 = vmatprep.subr.mxu0 0.0
    %1324 = vmatpush1.msra.mxu0 0.0
    %1325 = vmatprep.subr.mxu0 0.0
    %1326 = vmatpush1.msra.mxu0 0.0
    %1327 = vmatprep.subr.mxu0 0.0
    %1328 = vmatpush1.msra.mxu0 0.0
    %1329 = vmatprep.subr.mxu0 0.0
    %1330 = vmatpush1.msra.mxu0 0.0
    %1331 = vmatprep.subr.mxu0 0.0
    %1332 = vmatpush1.msra.mxu0 0.0
    %1333 = vmatprep.mubr.f32.mxu0 0.0
    %1334 = vmatmul.mubr.f32.gmra.mrb[0].mxu0 %v1196
    %v1335 = vpop.f32.mrb[0].mxu0
    %v1336 = vadd.f32 0.0, %v1335
    %v1337 = vpop.f32.mrb[0].mxu0
    %v1338 = vadd.f32 0.0, %v1337
    %1339 = vdwg.mxu0
    %v1340 = vadd.f32 %v455, %v1265
    %v1341 = vadd.f32 %v457, %v1267
    %v1342 = vadd.f32 %v568, %v1336
    %v1343 = vadd.f32 %v570, %v1338
    %v1344 = vxor.u32 %v1340, 2147483648
    %v1345 = vmul.f32 %v1344, 1.442695
    %v1346 = vpow.pop %v1345
    %v1347 = vadd.f32 %v1346, 1.0
    %v1348 = vrcp.pop %v1347
    %v1349 = vmul.f32 1.0, %v1348
    %v1350 = vxor.u32 %v1341, 2147483648
    %v1351 = vmul.f32 %v1350, 1.442695
    %v1352 = vpow.pop %v1351
    %v1353 = vadd.f32 %v1352, 1.0
    %v1354 = vrcp.pop %v1353
    %v1355 = vmul.f32 1.0, %v1354
    %v1356 = vtanh.pop %v1342
    %v1357 = vxor.u32 %v1343, 2147483648
    %v1358 = vmul.f32 %v1357, 1.442695
    %v1359 = vpow.pop %v1358
    %v1360 = vadd.f32 %v1359, 1.0
    %v1361 = vrcp.pop %v1360
    %v1362 = vmul.f32 1.0, %v1361
    %v1363 = vmul.f32 %v1355, %v1195
    %v1364 = vmul.f32 %v1349, %v1356
    %v1365 = vadd.f32 %v1363, %v1364
    %v1366 = vtanh.pop %v1365
    %v1367 = vmul.f32 %v1362, %v1366
    %1368 = vset.pattern.permute.xlu0 3
    %1369 = vperm.xlu0 %1368, %v837
    %v1370 = vpop.permute.xlu0 %1369
    %vm1371 = vcmp.eq.s32.totalorder %v1370, 1
    %v1372 = vsel %vm1371, %v1365, %v1195
    %v1373 = vsel %vm1371, %v1367, %v1196
    %v1374 = vsel %vm1371, %v1367, 0.0
    %1375 = vmatprep.subr.mxu0 %v604
    %1376 = vmatpush1.msra.mxu0 %v603
    %1377 = vmatprep.subr.mxu0 %v608
    %1378 = vmatpush1.msra.mxu0 %v607
    %1379 = vmatprep.subr.mxu0 %v612
    %1380 = vmatpush1.msra.mxu0 %v611
    %1381 = vmatprep.subr.mxu0 %v616
    %1382 = vmatpush1.msra.mxu0 %v615
    %1383 = vmatprep.subr.mxu0 %v620
    %1384 = vmatpush1.msra.mxu0 %v619
    %1385 = vmatprep.subr.mxu0 %v624
    %1386 = vmatpush1.msra.mxu0 %v623
    %1387 = vmatprep.subr.mxu0 %v628
    %1388 = vmatpush1.msra.mxu0 %v627
    %1389 = vmatprep.subr.mxu0 %v632
    %1390 = vmatpush1.msra.mxu0 %v631
    %1391 = vmatprep.subr.mxu0 %v636
    %1392 = vmatpush1.msra.mxu0 %v635
    %1393 = vmatprep.subr.mxu0 %v640
    %1394 = vmatpush1.msra.mxu0 %v639
    %1395 = vmatprep.subr.mxu0 %v644
    %1396 = vmatpush1.msra.mxu0 %v643
    %1397 = vmatprep.subr.mxu0 %v648
    %1398 = vmatpush1.msra.mxu0 %v647
    %1399 = vmatprep.subr.mxu0 %v652
    %1400 = vmatpush1.msra.mxu0 %v651
    %1401 = vmatprep.subr.mxu0 %v656
    %1402 = vmatpush1.msra.mxu0 %v655
    %1403 = vmatprep.subr.mxu0 %v660
    %1404 = vmatpush1.msra.mxu0 %v659
    %1405 = vmatprep.subr.mxu0 %v664
    %1406 = vmatpush1.msra.mxu0 %v663
    %1407 = vmatprep.subr.mxu0 0.0
    %1408 = vmatpush1.msra.mxu0 0.0
    %1409 = vmatprep.subr.mxu0 0.0
    %1410 = vmatpush1.msra.mxu0 0.0
    %1411 = vmatprep.subr.mxu0 0.0
    %1412 = vmatpush1.msra.mxu0 0.0
    %1413 = vmatprep.subr.mxu0 0.0
    %1414 = vmatpush1.msra.mxu0 0.0
    %1415 = vmatprep.subr.mxu0 0.0
    %1416 = vmatpush1.msra.mxu0 0.0
    %1417 = vmatprep.subr.mxu0 0.0
    %1418 = vmatpush1.msra.mxu0 0.0
    %1419 = vmatprep.subr.mxu0 0.0
    %1420 = vmatpush1.msra.mxu0 0.0
    %1421 = vmatprep.subr.mxu0 0.0
    %1422 = vmatpush1.msra.mxu0 0.0
    %1423 = vmatprep.subr.mxu0 0.0
    %1424 = vmatpush1.msra.mxu0 0.0
    %1425 = vmatprep.subr.mxu0 0.0
    %1426 = vmatpush1.msra.mxu0 0.0
    %1427 = vmatprep.subr.mxu0 0.0
    %1428 = vmatpush1.msra.mxu0 0.0
    %1429 = vmatprep.subr.mxu0 0.0
    %1430 = vmatpush1.msra.mxu0 0.0
    %1431 = vmatprep.subr.mxu0 0.0
    %1432 = vmatpush1.msra.mxu0 0.0
    %1433 = vmatprep.subr.mxu0 0.0
    %1434 = vmatpush1.msra.mxu0 0.0
    %1435 = vmatprep.subr.mxu0 0.0
    %1436 = vmatpush1.msra.mxu0 0.0
    %1437 = vmatprep.subr.mxu0 0.0
    %1438 = vmatpush1.msra.mxu0 0.0
    %1439 = vmatprep.mubr.f32.mxu0 0.0
    %1440 = vmatmul.mubr.f32.gmra.mrb[0].mxu0 %v1373
    %v1441 = vpop.f32.mrb[0].mxu0
    %v1442 = vadd.f32 0.0, %v1441
    %v1443 = vpop.f32.mrb[0].mxu0
    %v1444 = vadd.f32 0.0, %v1443
    %1445 = vdwg.mxu0
    %1446 = vmatprep.subr.mxu0 %v606
    %1447 = vmatpush1.msra.mxu0 %v605
    %1448 = vmatprep.subr.mxu0 %v610
    %1449 = vmatpush1.msra.mxu0 %v609
    %1450 = vmatprep.subr.mxu0 %v614
    %1451 = vmatpush1.msra.mxu0 %v613
    %1452 = vmatprep.subr.mxu0 %v618
    %1453 = vmatpush1.msra.mxu0 %v617
    %1454 = vmatprep.subr.mxu0 %v622
    %1455 = vmatpush1.msra.mxu0 %v621
    %1456 = vmatprep.subr.mxu0 %v626
    %1457 = vmatpush1.msra.mxu0 %v625
    %1458 = vmatprep.subr.mxu0 %v630
    %1459 = vmatpush1.msra.mxu0 %v629
    %1460 = vmatprep.subr.mxu0 %v634
    %1461 = vmatpush1.msra.mxu0 %v633
    %1462 = vmatprep.subr.mxu0 %v638
    %1463 = vmatpush1.msra.mxu0 %v637
    %1464 = vmatprep.subr.mxu0 %v642
    %1465 = vmatpush1.msra.mxu0 %v641
    %1466 = vmatprep.subr.mxu0 %v646
    %1467 = vmatpush1.msra.mxu0 %v645
    %1468 = vmatprep.subr.mxu0 %v650
    %1469 = vmatpush1.msra.mxu0 %v649
    %1470 = vmatprep.subr.mxu0 %v654
    %1471 = vmatpush1.msra.mxu0 %v653
    %1472 = vmatprep.subr.mxu0 %v658
    %1473 = vmatpush1.msra.mxu0 %v657
    %1474 = vmatprep.subr.mxu0 %v662
    %1475 = vmatpush1.msra.mxu0 %v661
    %1476 = vmatprep.subr.mxu0 %v666
    %1477 = vmatpush1.msra.mxu0 %v665
    %1478 = vmatprep.subr.mxu0 0.0
    %1479 = vmatpush1.msra.mxu0 0.0
    %1480 = vmatprep.subr.mxu0 0.0
    %1481 = vmatpush1.msra.mxu0 0.0
    %1482 = vmatprep.subr.mxu0 0.0
    %1483 = vmatpush1.msra.mxu0 0.0
    %1484 = vmatprep.subr.mxu0 0.0
    %1485 = vmatpush1.msra.mxu0 0.0
    %1486 = vmatprep.subr.mxu0 0.0
    %1487 = vmatpush1.msra.mxu0 0.0
    %1488 = vmatprep.subr.mxu0 0.0
    %1489 = vmatpush1.msra.mxu0 0.0
    %1490 = vmatprep.subr.mxu0 0.0
    %1491 = vmatpush1.msra.mxu0 0.0
    %1492 = vmatprep.subr.mxu0 0.0
    %1493 = vmatpush1.msra.mxu0 0.0
    %1494 = vmatprep.subr.mxu0 0.0
    %1495 = vmatpush1.msra.mxu0 0.0
    %1496 = vmatprep.subr.mxu0 0.0
    %1497 = vmatpush1.msra.mxu0 0.0
    %1498 = vmatprep.subr.mxu0 0.0
    %1499 = vmatpush1.msra.mxu0 0.0
    %1500 = vmatprep.subr.mxu0 0.0
    %1501 = vmatpush1.msra.mxu0 0.0
    %1502 = vmatprep.subr.mxu0 0.0
    %1503 = vmatpush1.msra.mxu0 0.0
    %1504 = vmatprep.subr.mxu0 0.0
    %1505 = vmatpush1.msra.mxu0 0.0
    %1506 = vmatprep.subr.mxu0 0.0
    %1507 = vmatpush1.msra.mxu0 0.0
    %1508 = vmatprep.subr.mxu0 0.0
    %1509 = vmatpush1.msra.mxu0 0.0
    %1510 = vmatprep.mubr.f32.mxu0 0.0
    %1511 = vmatmul.mubr.f32.gmra.mrb[0].mxu0 %v1373
    %v1512 = vpop.f32.mrb[0].mxu0
    %v1513 = vadd.f32 0.0, %v1512
    %v1514 = vpop.f32.mrb[0].mxu0
    %v1515 = vadd.f32 0.0, %v1514
    %1516 = vdwg.mxu0
    %v1517 = vadd.f32 %v461, %v1442
    %v1518 = vadd.f32 %v463, %v1444
    %v1519 = vadd.f32 %v574, %v1513
    %v1520 = vadd.f32 %v576, %v1515
    %v1521 = vxor.u32 %v1517, 2147483648
    %v1522 = vmul.f32 %v1521, 1.442695
    %v1523 = vpow.pop %v1522
    %v1524 = vadd.f32 %v1523, 1.0
    %v1525 = vrcp.pop %v1524
    %v1526 = vmul.f32 1.0, %v1525
    %v1527 = vxor.u32 %v1518, 2147483648
    %v1528 = vmul.f32 %v1527, 1.442695
    %v1529 = vpow.pop %v1528
    %v1530 = vadd.f32 %v1529, 1.0
    %v1531 = vrcp.pop %v1530
    %v1532 = vmul.f32 1.0, %v1531
    %v1533 = vtanh.pop %v1519
    %v1534 = vxor.u32 %v1520, 2147483648
    %v1535 = vmul.f32 %v1534, 1.442695
    %v1536 = vpow.pop %v1535
    %v1537 = vadd.f32 %v1536, 1.0
    %v1538 = vrcp.pop %v1537
    %v1539 = vmul.f32 1.0, %v1538
    %v1540 = vmul.f32 %v1532, %v1372
    %v1541 = vmul.f32 %v1526, %v1533
    %v1542 = vadd.f32 %v1540, %v1541
    %v1543 = vtanh.pop %v1542
    %v1544 = vmul.f32 %v1539, %v1543
    %1545 = vset.pattern.permute.xlu0 4
    %1546 = vperm.xlu0 %1545, %v837
    %v1547 = vpop.permute.xlu0 %1546
    %vm1548 = vcmp.eq.s32.totalorder %v1547, 1
    %v1549 = vsel %vm1548, %v1542, %v1372
    %v1550 = vsel %vm1548, %v1544, %v1373
    %v1551 = vsel %vm1548, %v1544, 0.0
    %1552 = vmatprep.subr.mxu0 %v604
    %1553 = vmatpush1.msra.mxu0 %v603
    %1554 = vmatprep.subr.mxu0 %v608
    %1555 = vmatpush1.msra.mxu0 %v607
    %1556 = vmatprep.subr.mxu0 %v612
    %1557 = vmatpush1.msra.mxu0 %v611
    %1558 = vmatprep.subr.mxu0 %v616
    %1559 = vmatpush1.msra.mxu0 %v615
    %1560 = vmatprep.subr.mxu0 %v620
    %1561 = vmatpush1.msra.mxu0 %v619
    %1562 = vmatprep.subr.mxu0 %v624
    %1563 = vmatpush1.msra.mxu0 %v623
    %1564 = vmatprep.subr.mxu0 %v628
    %1565 = vmatpush1.msra.mxu0 %v627
    %1566 = vmatprep.subr.mxu0 %v632
    %1567 = vmatpush1.msra.mxu0 %v631
    %1568 = vmatprep.subr.mxu0 %v636
    %1569 = vmatpush1.msra.mxu0 %v635
    %1570 = vmatprep.subr.mxu0 %v640
    %1571 = vmatpush1.msra.mxu0 %v639
    %1572 = vmatprep.subr.mxu0 %v644
    %1573 = vmatpush1.msra.mxu0 %v643
    %1574 = vmatprep.subr.mxu0 %v648
    %1575 = vmatpush1.msra.mxu0 %v647
    %1576 = vmatprep.subr.mxu0 %v652
    %1577 = vmatpush1.msra.mxu0 %v651
    %1578 = vmatprep.subr.mxu0 %v656
    %1579 = vmatpush1.msra.mxu0 %v655
    %1580 = vmatprep.subr.mxu0 %v660
    %1581 = vmatpush1.msra.mxu0 %v659
    %1582 = vmatprep.subr.mxu0 %v664
    %1583 = vmatpush1.msra.mxu0 %v663
    %1584 = vmatprep.subr.mxu0 0.0
    %1585 = vmatpush1.msra.mxu0 0.0
    %1586 = vmatprep.subr.mxu0 0.0
    %1587 = vmatpush1.msra.mxu0 0.0
    %1588 = vmatprep.subr.mxu0 0.0
    %1589 = vmatpush1.msra.mxu0 0.0
    %1590 = vmatprep.subr.mxu0 0.0
    %1591 = vmatpush1.msra.mxu0 0.0
    %1592 = vmatprep.subr.mxu0 0.0
    %1593 = vmatpush1.msra.mxu0 0.0
    %1594 = vmatprep.subr.mxu0 0.0
    %1595 = vmatpush1.msra.mxu0 0.0
    %1596 = vmatprep.subr.mxu0 0.0
    %1597 = vmatpush1.msra.mxu0 0.0
    %1598 = vmatprep.subr.mxu0 0.0
    %1599 = vmatpush1.msra.mxu0 0.0
    %1600 = vmatprep.subr.mxu0 0.0
    %1601 = vmatpush1.msra.mxu0 0.0
    %1602 = vmatprep.subr.mxu0 0.0
    %1603 = vmatpush1.msra.mxu0 0.0
    %1604 = vmatprep.subr.mxu0 0.0
    %1605 = vmatpush1.msra.mxu0 0.0
    %1606 = vmatprep.subr.mxu0 0.0
    %1607 = vmatpush1.msra.mxu0 0.0
    %1608 = vmatprep.subr.mxu0 0.0
    %1609 = vmatpush1.msra.mxu0 0.0
    %1610 = vmatprep.subr.mxu0 0.0
    %1611 = vmatpush1.msra.mxu0 0.0
    %1612 = vmatprep.subr.mxu0 0.0
    %1613 = vmatpush1.msra.mxu0 0.0
    %1614 = vmatprep.subr.mxu0 0.0
    %1615 = vmatpush1.msra.mxu0 0.0
    %1616 = vmatprep.mubr.f32.mxu0 0.0
    %1617 = vmatmul.mubr.f32.gmra.mrb[0].mxu0 %v1550
    %v1618 = vpop.f32.mrb[0].mxu0
    %v1619 = vadd.f32 0.0, %v1618
    %v1620 = vpop.f32.mrb[0].mxu0
    %v1621 = vadd.f32 0.0, %v1620
    %1622 = vdwg.mxu0
    %1623 = vmatprep.subr.mxu0 %v606
    %1624 = vmatpush1.msra.mxu0 %v605
    %1625 = vmatprep.subr.mxu0 %v610
    %1626 = vmatpush1.msra.mxu0 %v609
    %1627 = vmatprep.subr.mxu0 %v614
    %1628 = vmatpush1.msra.mxu0 %v613
    %1629 = vmatprep.subr.mxu0 %v618
    %1630 = vmatpush1.msra.mxu0 %v617
    %1631 = vmatprep.subr.mxu0 %v622
    %1632 = vmatpush1.msra.mxu0 %v621
    %1633 = vmatprep.subr.mxu0 %v626
    %1634 = vmatpush1.msra.mxu0 %v625
    %1635 = vmatprep.subr.mxu0 %v630
    %1636 = vmatpush1.msra.mxu0 %v629
    %1637 = vmatprep.subr.mxu0 %v634
    %1638 = vmatpush1.msra.mxu0 %v633
    %1639 = vmatprep.subr.mxu0 %v638
    %1640 = vmatpush1.msra.mxu0 %v637
    %1641 = vmatprep.subr.mxu0 %v642
    %1642 = vmatpush1.msra.mxu0 %v641
    %1643 = vmatprep.subr.mxu0 %v646
    %1644 = vmatpush1.msra.mxu0 %v645
    %1645 = vmatprep.subr.mxu0 %v650
    %1646 = vmatpush1.msra.mxu0 %v649
    %1647 = vmatprep.subr.mxu0 %v654
    %1648 = vmatpush1.msra.mxu0 %v653
    %1649 = vmatprep.subr.mxu0 %v658
    %1650 = vmatpush1.msra.mxu0 %v657
    %1651 = vmatprep.subr.mxu0 %v662
    %1652 = vmatpush1.msra.mxu0 %v661
    %1653 = vmatprep.subr.mxu0 %v666
    %1654 = vmatpush1.msra.mxu0 %v665
    %1655 = vmatprep.subr.mxu0 0.0
    %1656 = vmatpush1.msra.mxu0 0.0
    %1657 = vmatprep.subr.mxu0 0.0
    %1658 = vmatpush1.msra.mxu0 0.0
    %1659 = vmatprep.subr.mxu0 0.0
    %1660 = vmatpush1.msra.mxu0 0.0
    %1661 = vmatprep.subr.mxu0 0.0
    %1662 = vmatpush1.msra.mxu0 0.0
    %1663 = vmatprep.subr.mxu0 0.0
    %1664 = vmatpush1.msra.mxu0 0.0
    %1665 = vmatprep.subr.mxu0 0.0
    %1666 = vmatpush1.msra.mxu0 0.0
    %1667 = vmatprep.subr.mxu0 0.0
    %1668 = vmatpush1.msra.mxu0 0.0
    %1669 = vmatprep.subr.mxu0 0.0
    %1670 = vmatpush1.msra.mxu0 0.0
    %1671 = vmatprep.subr.mxu0 0.0
    %1672 = vmatpush1.msra.mxu0 0.0
    %1673 = vmatprep.subr.mxu0 0.0
    %1674 = vmatpush1.msra.mxu0 0.0
    %1675 = vmatprep.subr.mxu0 0.0
    %1676 = vmatpush1.msra.mxu0 0.0
    %1677 = vmatprep.subr.mxu0 0.0
    %1678 = vmatpush1.msra.mxu0 0.0
    %1679 = vmatprep.subr.mxu0 0.0
    %1680 = vmatpush1.msra.mxu0 0.0
    %1681 = vmatprep.subr.mxu0 0.0
    %1682 = vmatpush1.msra.mxu0 0.0
    %1683 = vmatprep.subr.mxu0 0.0
    %1684 = vmatpush1.msra.mxu0 0.0
    %1685 = vmatprep.subr.mxu0 0.0
    %1686 = vmatpush1.msra.mxu0 0.0
    %1687 = vmatprep.mubr.f32.mxu0 0.0
    %1688 = vmatmul.mubr.f32.gmra.mrb[0].mxu0 %v1550
    %v1689 = vpop.f32.mrb[0].mxu0
    %v1690 = vadd.f32 0.0, %v1689
    %v1691 = vpop.f32.mrb[0].mxu0
    %v1692 = vadd.f32 0.0, %v1691
    %1693 = vdwg.mxu0
    %v1694 = vadd.f32 %v467, %v1619
    %v1695 = vadd.f32 %v469, %v1621
    %v1696 = vadd.f32 %v580, %v1690
    %v1697 = vadd.f32 %v582, %v1692
    %v1698 = vxor.u32 %v1694, 2147483648
    %v1699 = vmul.f32 %v1698, 1.442695
    %v1700 = vpow.pop %v1699
    %v1701 = vadd.f32 %v1700, 1.0
    %v1702 = vrcp.pop %v1701
    %v1703 = vmul.f32 1.0, %v1702
    %v1704 = vxor.u32 %v1695, 2147483648
    %v1705 = vmul.f32 %v1704, 1.442695
    %v1706 = vpow.pop %v1705
    %v1707 = vadd.f32 %v1706, 1.0
    %v1708 = vrcp.pop %v1707
    %v1709 = vmul.f32 1.0, %v1708
    %v1710 = vtanh.pop %v1696
    %v1711 = vxor.u32 %v1697, 2147483648
    %v1712 = vmul.f32 %v1711, 1.442695
    %v1713 = vpow.pop %v1712
    %v1714 = vadd.f32 %v1713, 1.0
    %v1715 = vrcp.pop %v1714
    %v1716 = vmul.f32 1.0, %v1715
    %v1717 = vmul.f32 %v1709, %v1549
    %v1718 = vmul.f32 %v1703, %v1710
    %v1719 = vadd.f32 %v1717, %v1718
    %v1720 = vtanh.pop %v1719
    %v1721 = vmul.f32 %v1716, %v1720
    %1722 = vset.pattern.permute.xlu0 5
    %1723 = vperm.xlu0 %1722, %v837
    %v1724 = vpop.permute.xlu0 %1723
    %vm1725 = vcmp.eq.s32.totalorder %v1724, 1
    %v1726 = vsel %vm1725, %v1719, %v1549
    %v1727 = vsel %vm1725, %v1721, %v1550
    %v1728 = vsel %vm1725, %v1721, 0.0
    %1729 = vmatprep.subr.mxu0 %v604
    %1730 = vmatpush1.msra.mxu0 %v603
    %1731 = vmatprep.subr.mxu0 %v608
    %1732 = vmatpush1.msra.mxu0 %v607
    %1733 = vmatprep.subr.mxu0 %v612
    %1734 = vmatpush1.msra.mxu0 %v611
    %1735 = vmatprep.subr.mxu0 %v616
    %1736 = vmatpush1.msra.mxu0 %v615
    %1737 = vmatprep.subr.mxu0 %v620
    %1738 = vmatpush1.msra.mxu0 %v619
    %1739 = vmatprep.subr.mxu0 %v624
    %1740 = vmatpush1.msra.mxu0 %v623
    %1741 = vmatprep.subr.mxu0 %v628
    %1742 = vmatpush1.msra.mxu0 %v627
    %1743 = vmatprep.subr.mxu0 %v632
    %1744 = vmatpush1.msra.mxu0 %v631
    %1745 = vmatprep.subr.mxu0 %v636
    %1746 = vmatpush1.msra.mxu0 %v635
    %1747 = vmatprep.subr.mxu0 %v640
    %1748 = vmatpush1.msra.mxu0 %v639
    %1749 = vmatprep.subr.mxu0 %v644
    %1750 = vmatpush1.msra.mxu0 %v643
    %1751 = vmatprep.subr.mxu0 %v648
    %1752 = vmatpush1.msra.mxu0 %v647
    %1753 = vmatprep.subr.mxu0 %v652
    %1754 = vmatpush1.msra.mxu0 %v651
    %1755 = vmatprep.subr.mxu0 %v656
    %1756 = vmatpush1.msra.mxu0 %v655
    %1757 = vmatprep.subr.mxu0 %v660
    %1758 = vmatpush1.msra.mxu0 %v659
    %1759 = vmatprep.subr.mxu0 %v664
    %1760 = vmatpush1.msra.mxu0 %v663
    %1761 = vmatprep.subr.mxu0 0.0
    %1762 = vmatpush1.msra.mxu0 0.0
    %1763 = vmatprep.subr.mxu0 0.0
    %1764 = vmatpush1.msra.mxu0 0.0
    %1765 = vmatprep.subr.mxu0 0.0
    %1766 = vmatpush1.msra.mxu0 0.0
    %1767 = vmatprep.subr.mxu0 0.0
    %1768 = vmatpush1.msra.mxu0 0.0
    %1769 = vmatprep.subr.mxu0 0.0
    %1770 = vmatpush1.msra.mxu0 0.0
    %1771 = vmatprep.subr.mxu0 0.0
    %1772 = vmatpush1.msra.mxu0 0.0
    %1773 = vmatprep.subr.mxu0 0.0
    %1774 = vmatpush1.msra.mxu0 0.0
    %1775 = vmatprep.subr.mxu0 0.0
    %1776 = vmatpush1.msra.mxu0 0.0
    %1777 = vmatprep.subr.mxu0 0.0
    %1778 = vmatpush1.msra.mxu0 0.0
    %1779 = vmatprep.subr.mxu0 0.0
    %1780 = vmatpush1.msra.mxu0 0.0
    %1781 = vmatprep.subr.mxu0 0.0
    %1782 = vmatpush1.msra.mxu0 0.0
    %1783 = vmatprep.subr.mxu0 0.0
    %1784 = vmatpush1.msra.mxu0 0.0
    %1785 = vmatprep.subr.mxu0 0.0
    %1786 = vmatpush1.msra.mxu0 0.0
    %1787 = vmatprep.subr.mxu0 0.0
    %1788 = vmatpush1.msra.mxu0 0.0
    %1789 = vmatprep.subr.mxu0 0.0
    %1790 = vmatpush1.msra.mxu0 0.0
    %1791 = vmatprep.subr.mxu0 0.0
    %1792 = vmatpush1.msra.mxu0 0.0
    %1793 = vmatprep.mubr.f32.mxu0 0.0
    %1794 = vmatmul.mubr.f32.gmra.mrb[0].mxu0 %v1727
    %v1795 = vpop.f32.mrb[0].mxu0
    %v1796 = vadd.f32 0.0, %v1795
    %v1797 = vpop.f32.mrb[0].mxu0
    %v1798 = vadd.f32 0.0, %v1797
    %1799 = vdwg.mxu0
    %1800 = vmatprep.subr.mxu0 %v606
    %1801 = vmatpush1.msra.mxu0 %v605
    %1802 = vmatprep.subr.mxu0 %v610
    %1803 = vmatpush1.msra.mxu0 %v609
    %1804 = vmatprep.subr.mxu0 %v614
    %1805 = vmatpush1.msra.mxu0 %v613
    %1806 = vmatprep.subr.mxu0 %v618
    %1807 = vmatpush1.msra.mxu0 %v617
    %1808 = vmatprep.subr.mxu0 %v622
    %1809 = vmatpush1.msra.mxu0 %v621
    %1810 = vmatprep.subr.mxu0 %v626
    %1811 = vmatpush1.msra.mxu0 %v625
    %1812 = vmatprep.subr.mxu0 %v630
    %1813 = vmatpush1.msra.mxu0 %v629
    %1814 = vmatprep.subr.mxu0 %v634
    %1815 = vmatpush1.msra.mxu0 %v633
    %1816 = vmatprep.subr.mxu0 %v638
    %1817 = vmatpush1.msra.mxu0 %v637
    %1818 = vmatprep.subr.mxu0 %v642
    %1819 = vmatpush1.msra.mxu0 %v641
    %1820 = vmatprep.subr.mxu0 %v646
    %1821 = vmatpush1.msra.mxu0 %v645
    %1822 = vmatprep.subr.mxu0 %v650
    %1823 = vmatpush1.msra.mxu0 %v649
    %1824 = vmatprep.subr.mxu0 %v654
    %1825 = vmatpush1.msra.mxu0 %v653
    %1826 = vmatprep.subr.mxu0 %v658
    %1827 = vmatpush1.msra.mxu0 %v657
    %1828 = vmatprep.subr.mxu0 %v662
    %1829 = vmatpush1.msra.mxu0 %v661
    %1830 = vmatprep.subr.mxu0 %v666
    %1831 = vmatpush1.msra.mxu0 %v665
    %1832 = vmatprep.subr.mxu0 0.0
    %1833 = vmatpush1.msra.mxu0 0.0
    %1834 = vmatprep.subr.mxu0 0.0
    %1835 = vmatpush1.msra.mxu0 0.0
    %1836 = vmatprep.subr.mxu0 0.0
    %1837 = vmatpush1.msra.mxu0 0.0
    %1838 = vmatprep.subr.mxu0 0.0
    %1839 = vmatpush1.msra.mxu0 0.0
    %1840 = vmatprep.subr.mxu0 0.0
    %1841 = vmatpush1.msra.mxu0 0.0
    %1842 = vmatprep.subr.mxu0 0.0
    %1843 = vmatpush1.msra.mxu0 0.0
    %1844 = vmatprep.subr.mxu0 0.0
    %1845 = vmatpush1.msra.mxu0 0.0
    %1846 = vmatprep.subr.mxu0 0.0
    %1847 = vmatpush1.msra.mxu0 0.0
    %1848 = vmatprep.subr.mxu0 0.0
    %1849 = vmatpush1.msra.mxu0 0.0
    %1850 = vmatprep.subr.mxu0 0.0
    %1851 = vmatpush1.msra.mxu0 0.0
    %1852 = vmatprep.subr.mxu0 0.0
    %1853 = vmatpush1.msra.mxu0 0.0
    %1854 = vmatprep.subr.mxu0 0.0
    %1855 = vmatpush1.msra.mxu0 0.0
    %1856 = vmatprep.subr.mxu0 0.0
    %1857 = vmatpush1.msra.mxu0 0.0
    %1858 = vmatprep.subr.mxu0 0.0
    %1859 = vmatpush1.msra.mxu0 0.0
    %1860 = vmatprep.subr.mxu0 0.0
    %1861 = vmatpush1.msra.mxu0 0.0
    %1862 = vmatprep.subr.mxu0 0.0
    %1863 = vmatpush1.msra.mxu0 0.0
    %1864 = vmatprep.mubr.f32.mxu0 0.0
    %1865 = vmatmul.mubr.f32.gmra.mrb[0].mxu0 %v1727
    %v1866 = vpop.f32.mrb[0].mxu0
    %v1867 = vadd.f32 0.0, %v1866
    %v1868 = vpop.f32.mrb[0].mxu0
    %v1869 = vadd.f32 0.0, %v1868
    %1870 = vdwg.mxu0
    %v1871 = vadd.f32 %v473, %v1796
    %v1872 = vadd.f32 %v475, %v1798
    %v1873 = vadd.f32 %v586, %v1867
    %v1874 = vadd.f32 %v588, %v1869
    %v1875 = vxor.u32 %v1871, 2147483648
    %v1876 = vmul.f32 %v1875, 1.442695
    %v1877 = vpow.pop %v1876
    %v1878 = vadd.f32 %v1877, 1.0
    %v1879 = vrcp.pop %v1878
    %v1880 = vmul.f32 1.0, %v1879
    %v1881 = vxor.u32 %v1872, 2147483648
    %v1882 = vmul.f32 %v1881, 1.442695
    %v1883 = vpow.pop %v1882
    %v1884 = vadd.f32 %v1883, 1.0
    %v1885 = vrcp.pop %v1884
    %v1886 = vmul.f32 1.0, %v1885
    %v1887 = vtanh.pop %v1873
    %v1888 = vxor.u32 %v1874, 2147483648
    %v1889 = vmul.f32 %v1888, 1.442695
    %v1890 = vpow.pop %v1889
    %v1891 = vadd.f32 %v1890, 1.0
    %v1892 = vrcp.pop %v1891
    %v1893 = vmul.f32 1.0, %v1892
    %v1894 = vmul.f32 %v1886, %v1726
    %v1895 = vmul.f32 %v1880, %v1887
    %v1896 = vadd.f32 %v1894, %v1895
    %v1897 = vtanh.pop %v1896
    %v1898 = vmul.f32 %v1893, %v1897
    %1899 = vset.pattern.permute.xlu0 6
    %1900 = vperm.xlu0 %1899, %v837
    %v1901 = vpop.permute.xlu0 %1900
    %vm1902 = vcmp.eq.s32.totalorder %v1901, 1
    %v1903 = vsel %vm1902, %v1896, %v1726
    %v1904 = vsel %vm1902, %v1898, %v1727
    %v1905 = vsel %vm1902, %v1898, 0.0
    %1906 = vmatprep.subr.mxu0 %v604
    %1907 = vmatpush1.msra.mxu0 %v603
    %1908 = vmatprep.subr.mxu0 %v608
    %1909 = vmatpush1.msra.mxu0 %v607
    %1910 = vmatprep.subr.mxu0 %v612
    %1911 = vmatpush1.msra.mxu0 %v611
    %1912 = vmatprep.subr.mxu0 %v616
    %1913 = vmatpush1.msra.mxu0 %v615
    %1914 = vmatprep.subr.mxu0 %v620
    %1915 = vmatpush1.msra.mxu0 %v619
    %1916 = vmatprep.subr.mxu0 %v624
    %1917 = vmatpush1.msra.mxu0 %v623
    %1918 = vmatprep.subr.mxu0 %v628
    %1919 = vmatpush1.msra.mxu0 %v627
    %1920 = vmatprep.subr.mxu0 %v632
    %1921 = vmatpush1.msra.mxu0 %v631
    %1922 = vmatprep.subr.mxu0 %v636
    %1923 = vmatpush1.msra.mxu0 %v635
    %1924 = vmatprep.subr.mxu0 %v640
    %1925 = vmatpush1.msra.mxu0 %v639
    %1926 = vmatprep.subr.mxu0 %v644
    %1927 = vmatpush1.msra.mxu0 %v643
    %1928 = vmatprep.subr.mxu0 %v648
    %1929 = vmatpush1.msra.mxu0 %v647
    %1930 = vmatprep.subr.mxu0 %v652
    %1931 = vmatpush1.msra.mxu0 %v651
    %1932 = vmatprep.subr.mxu0 %v656
    %1933 = vmatpush1.msra.mxu0 %v655
    %1934 = vmatprep.subr.mxu0 %v660
    %1935 = vmatpush1.msra.mxu0 %v659
    %1936 = vmatprep.subr.mxu0 %v664
    %1937 = vmatpush1.msra.mxu0 %v663
    %1938 = vmatprep.subr.mxu0 0.0
    %1939 = vmatpush1.msra.mxu0 0.0
    %1940 = vmatprep.subr.mxu0 0.0
    %1941 = vmatpush1.msra.mxu0 0.0
    %1942 = vmatprep.subr.mxu0 0.0
    %1943 = vmatpush1.msra.mxu0 0.0
    %1944 = vmatprep.subr.mxu0 0.0
    %1945 = vmatpush1.msra.mxu0 0.0
    %1946 = vmatprep.subr.mxu0 0.0
    %1947 = vmatpush1.msra.mxu0 0.0
    %1948 = vmatprep.subr.mxu0 0.0
    %1949 = vmatpush1.msra.mxu0 0.0
    %1950 = vmatprep.subr.mxu0 0.0
    %1951 = vmatpush1.msra.mxu0 0.0
    %1952 = vmatprep.subr.mxu0 0.0
    %1953 = vmatpush1.msra.mxu0 0.0
    %1954 = vmatprep.subr.mxu0 0.0
    %1955 = vmatpush1.msra.mxu0 0.0
    %1956 = vmatprep.subr.mxu0 0.0
    %1957 = vmatpush1.msra.mxu0 0.0
    %1958 = vmatprep.subr.mxu0 0.0
    %1959 = vmatpush1.msra.mxu0 0.0
    %1960 = vmatprep.subr.mxu0 0.0
    %1961 = vmatpush1.msra.mxu0 0.0
    %1962 = vmatprep.subr.mxu0 0.0
    %1963 = vmatpush1.msra.mxu0 0.0
    %1964 = vmatprep.subr.mxu0 0.0
    %1965 = vmatpush1.msra.mxu0 0.0
    %1966 = vmatprep.subr.mxu0 0.0
    %1967 = vmatpush1.msra.mxu0 0.0
    %1968 = vmatprep.subr.mxu0 0.0
    %1969 = vmatpush1.msra.mxu0 0.0
    %1970 = vmatprep.mubr.f32.mxu0 0.0
    %1971 = vmatmul.mubr.f32.gmra.mrb[0].mxu0 %v1904
    %v1972 = vpop.f32.mrb[0].mxu0
    %v1973 = vadd.f32 0.0, %v1972
    %v1974 = vpop.f32.mrb[0].mxu0
    %v1975 = vadd.f32 0.0, %v1974
    %1976 = vdwg.mxu0
    %1977 = vmatprep.subr.mxu0 %v606
    %1978 = vmatpush1.msra.mxu0 %v605
    %1979 = vmatprep.subr.mxu0 %v610
    %1980 = vmatpush1.msra.mxu0 %v609
    %1981 = vmatprep.subr.mxu0 %v614
    %1982 = vmatpush1.msra.mxu0 %v613
    %1983 = vmatprep.subr.mxu0 %v618
    %1984 = vmatpush1.msra.mxu0 %v617
    %1985 = vmatprep.subr.mxu0 %v622
    %1986 = vmatpush1.msra.mxu0 %v621
    %1987 = vmatprep.subr.mxu0 %v626
    %1988 = vmatpush1.msra.mxu0 %v625
    %1989 = vmatprep.subr.mxu0 %v630
    %1990 = vmatpush1.msra.mxu0 %v629
    %1991 = vmatprep.subr.mxu0 %v634
    %1992 = vmatpush1.msra.mxu0 %v633
    %1993 = vmatprep.subr.mxu0 %v638
    %1994 = vmatpush1.msra.mxu0 %v637
    %1995 = vmatprep.subr.mxu0 %v642
    %1996 = vmatpush1.msra.mxu0 %v641
    %1997 = vmatprep.subr.mxu0 %v646
    %1998 = vmatpush1.msra.mxu0 %v645
    %1999 = vmatprep.subr.mxu0 %v650
    %2000 = vmatpush1.msra.mxu0 %v649
    %2001 = vmatprep.subr.mxu0 %v654
    %2002 = vmatpush1.msra.mxu0 %v653
    %2003 = vmatprep.subr.mxu0 %v658
    %2004 = vmatpush1.msra.mxu0 %v657
    %2005 = vmatprep.subr.mxu0 %v662
    %2006 = vmatpush1.msra.mxu0 %v661
    %2007 = vmatprep.subr.mxu0 %v666
    %2008 = vmatpush1.msra.mxu0 %v665
    %2009 = vmatprep.subr.mxu0 0.0
    %2010 = vmatpush1.msra.mxu0 0.0
    %2011 = vmatprep.subr.mxu0 0.0
    %2012 = vmatpush1.msra.mxu0 0.0
    %2013 = vmatprep.subr.mxu0 0.0
    %2014 = vmatpush1.msra.mxu0 0.0
    %2015 = vmatprep.subr.mxu0 0.0
    %2016 = vmatpush1.msra.mxu0 0.0
    %2017 = vmatprep.subr.mxu0 0.0
    %2018 = vmatpush1.msra.mxu0 0.0
    %2019 = vmatprep.subr.mxu0 0.0
    %2020 = vmatpush1.msra.mxu0 0.0
    %2021 = vmatprep.subr.mxu0 0.0
    %2022 = vmatpush1.msra.mxu0 0.0
    %2023 = vmatprep.subr.mxu0 0.0
    %2024 = vmatpush1.msra.mxu0 0.0
    %2025 = vmatprep.subr.mxu0 0.0
    %2026 = vmatpush1.msra.mxu0 0.0
    %2027 = vmatprep.subr.mxu0 0.0
    %2028 = vmatpush1.msra.mxu0 0.0
    %2029 = vmatprep.subr.mxu0 0.0
    %2030 = vmatpush1.msra.mxu0 0.0
    %2031 = vmatprep.subr.mxu0 0.0
    %2032 = vmatpush1.msra.mxu0 0.0
    %2033 = vmatprep.subr.mxu0 0.0
    %2034 = vmatpush1.msra.mxu0 0.0
    %2035 = vmatprep.subr.mxu0 0.0
    %2036 = vmatpush1.msra.mxu0 0.0
    %2037 = vmatprep.subr.mxu0 0.0
    %2038 = vmatpush1.msra.mxu0 0.0
    %2039 = vmatprep.subr.mxu0 0.0
    %2040 = vmatpush1.msra.mxu0 0.0
    %2041 = vmatprep.mubr.f32.mxu0 0.0
    %2042 = vmatmul.mubr.f32.gmra.mrb[0].mxu0 %v1904
    %v2043 = vpop.f32.mrb[0].mxu0
    %v2044 = vadd.f32 0.0, %v2043
    %v2045 = vpop.f32.mrb[0].mxu0
    %v2046 = vadd.f32 0.0, %v2045
    %2047 = vdwg.mxu0
    %v2048 = vadd.f32 %v479, %v1973
    %v2049 = vadd.f32 %v481, %v1975
    %v2050 = vadd.f32 %v592, %v2044
    %v2051 = vadd.f32 %v594, %v2046
    %v2052 = vxor.u32 %v2048, 2147483648
    %v2053 = vmul.f32 %v2052, 1.442695
    %v2054 = vpow.pop %v2053
    %v2055 = vadd.f32 %v2054, 1.0
    %v2056 = vrcp.pop %v2055
    %v2057 = vmul.f32 1.0, %v2056
    %v2058 = vxor.u32 %v2049, 2147483648
    %v2059 = vmul.f32 %v2058, 1.442695
    %v2060 = vpow.pop %v2059
    %v2061 = vadd.f32 %v2060, 1.0
    %v2062 = vrcp.pop %v2061
    %v2063 = vmul.f32 1.0, %v2062
    %v2064 = vtanh.pop %v2050
    %v2065 = vxor.u32 %v2051, 2147483648
    %v2066 = vmul.f32 %v2065, 1.442695
    %v2067 = vpow.pop %v2066
    %v2068 = vadd.f32 %v2067, 1.0
    %v2069 = vrcp.pop %v2068
    %v2070 = vmul.f32 1.0, %v2069
    %v2071 = vmul.f32 %v2063, %v1903
    %v2072 = vmul.f32 %v2057, %v2064
    %v2073 = vadd.f32 %v2071, %v2072
    %v2074 = vtanh.pop %v2073
    %v2075 = vmul.f32 %v2070, %v2074
    %2076 = vset.pattern.permute.xlu0 7
    %2077 = vperm.xlu0 %2076, %v837
    %v2078 = vpop.permute.xlu0 %2077
    %vm2079 = vcmp.eq.s32.totalorder %v2078, 1
    %v2080 = vsel %vm2079, %v2075, %v1904
    %v2081 = vsel %vm2079, %v2075, 0.0
    %v2082 = vld [vmem:[%s5] sm:$0xff]
    %v2083 = vld [vmem:[%s5 + $0x8] sm:$0xff]
    %v2084 = vld [vmem:[%s5 + $0x10] sm:$0xff]
    %v2085 = vld [vmem:[%s5 + $0x18] sm:$0xff]
    %v2086 = vld [vmem:[%s5 + $0x20] sm:$0xff]
    %v2087 = vld [vmem:[%s5 + $0x28] sm:$0xff]
    %v2088 = vld [vmem:[%s5 + $0x30] sm:$0xff]
    %v2089 = vld [vmem:[%s5 + $0x38] sm:$0xff]
    %v2090 = vld [vmem:[%s5 + $0x40] sm:$0xff]
    %v2091 = vld [vmem:[%s5 + $0x48] sm:$0xff]
    %v2092 = vld [vmem:[%s5 + $0x50] sm:$0xff]
    %v2093 = vld [vmem:[%s5 + $0x58] sm:$0xff]
    %v2094 = vld [vmem:[%s5 + $0x60] sm:$0xff]
    %v2095 = vld [vmem:[%s5 + $0x68] sm:$0xff]
    %v2096 = vld [vmem:[%s5 + $0x70] sm:$0xff]
    %v2097 = vld [vmem:[%s5 + $0x78] sm:$0xff]
    %v2098 = vld [vmem:[%s6] sm:$0x1]
    %v2100 = vlaneseq
    %v2101 = vshrl.u32 %v2100, 7
    %v2102 = vsub.s32 0, %v2101
    %v2103 = vrot.slane %v2098, %v2102
    %2105 = vmatprep.subr.mxu0 0.0
    %2106 = vmatpush1.msra.mxu0 %v2082
    %2107 = vmatprep.subr.mxu0 0.0
    %2108 = vmatpush1.msra.mxu0 %v2083
    %2109 = vmatprep.subr.mxu0 0.0
    %2110 = vmatpush1.msra.mxu0 %v2084
    %2111 = vmatprep.subr.mxu0 0.0
    %2112 = vmatpush1.msra.mxu0 %v2085
    %2113 = vmatprep.subr.mxu0 0.0
    %2114 = vmatpush1.msra.mxu0 %v2086
    %2115 = vmatprep.subr.mxu0 0.0
    %2116 = vmatpush1.msra.mxu0 %v2087
    %2117 = vmatprep.subr.mxu0 0.0
    %2118 = vmatpush1.msra.mxu0 %v2088
    %2119 = vmatprep.subr.mxu0 0.0
    %2120 = vmatpush1.msra.mxu0 %v2089
    %2121 = vmatprep.subr.mxu0 0.0
    %2122 = vmatpush1.msra.mxu0 %v2090
    %2123 = vmatprep.subr.mxu0 0.0
    %2124 = vmatpush1.msra.mxu0 %v2091
    %2125 = vmatprep.subr.mxu0 0.0
    %2126 = vmatpush1.msra.mxu0 %v2092
    %2127 = vmatprep.subr.mxu0 0.0
    %2128 = vmatpush1.msra.mxu0 %v2093
    %2129 = vmatprep.subr.mxu0 0.0
    %2130 = vmatpush1.msra.mxu0 %v2094
    %2131 = vmatprep.subr.mxu0 0.0
    %2132 = vmatpush1.msra.mxu0 %v2095
    %2133 = vmatprep.subr.mxu0 0.0
    %2134 = vmatpush1.msra.mxu0 %v2096
    %2135 = vmatprep.subr.mxu0 0.0
    %2136 = vmatpush1.msra.mxu0 %v2097
    %2137 = vmatprep.subr.mxu0 0.0
    %2138 = vmatpush1.msra.mxu0 0.0
    %2139 = vmatprep.subr.mxu0 0.0
    %2140 = vmatpush1.msra.mxu0 0.0
    %2141 = vmatprep.subr.mxu0 0.0
    %2142 = vmatpush1.msra.mxu0 0.0
    %2143 = vmatprep.subr.mxu0 0.0
    %2144 = vmatpush1.msra.mxu0 0.0
    %2145 = vmatprep.subr.mxu0 0.0
    %2146 = vmatpush1.msra.mxu0 0.0
    %2147 = vmatprep.subr.mxu0 0.0
    %2148 = vmatpush1.msra.mxu0 0.0
    %2149 = vmatprep.subr.mxu0 0.0
    %2150 = vmatpush1.msra.mxu0 0.0
    %2151 = vmatprep.subr.mxu0 0.0
    %2152 = vmatpush1.msra.mxu0 0.0
    %2153 = vmatprep.subr.mxu0 0.0
    %2154 = vmatpush1.msra.mxu0 0.0
    %2155 = vmatprep.subr.mxu0 0.0
    %2156 = vmatpush1.msra.mxu0 0.0
    %2157 = vmatprep.subr.mxu0 0.0
    %2158 = vmatpush1.msra.mxu0 0.0
    %2159 = vmatprep.subr.mxu0 0.0
    %2160 = vmatpush1.msra.mxu0 0.0
    %2161 = vmatprep.subr.mxu0 0.0
    %2162 = vmatpush1.msra.mxu0 0.0
    %2163 = vmatprep.subr.mxu0 0.0
    %2164 = vmatpush1.msra.mxu0 0.0
    %2165 = vmatprep.subr.mxu0 0.0
    %2166 = vmatpush1.msra.mxu0 0.0
    %2167 = vmatprep.subr.mxu0 0.0
    %2168 = vmatpush1.msra.mxu0 0.0
    %2169 = vmatprep.mubr.f32.mxu0 0.0
    %2170 = vmatmul.mubr.f32.gmra.mrb[0].mxu0 0.0
    %v2171 = vpop.f32.mrb[0].mxu0
    %v2172 = vadd.f32 %v2103, %v2171
    %v2173 = vpop.f32.mrb[0].mxu0
    %2174 = vmatprep.mubr.f32.mxu0 0.0
    %2175 = vmatmul.mubr.f32.gmra.mrb[0].mxu0 %v843
    %v2176 = vpop.f32.mrb[0].mxu0
    %v2177 = vadd.f32 %v2103, %v2176
    %v2178 = vpop.f32.mrb[0].mxu0
    %2179 = vmatprep.mubr.f32.mxu0 0.0
    %2180 = vmatmul.mubr.f32.gmra.mrb[0].mxu0 %v1020
    %v2181 = vpop.f32.mrb[0].mxu0
    %v2182 = vadd.f32 %v2103, %v2181
    %v2183 = vpop.f32.mrb[0].mxu0
    %2184 = vmatprep.mubr.f32.mxu0 0.0
    %2185 = vmatmul.mubr.f32.gmra.mrb[0].mxu0 %v1197
    %v2186 = vpop.f32.mrb[0].mxu0
    %v2187 = vadd.f32 %v2103, %v2186
    %v2188 = vpop.f32.mrb[0].mxu0
    %2189 = vmatprep.mubr.f32.mxu0 0.0
    %2190 = vmatmul.mubr.f32.gmra.mrb[0].mxu0 %v1374
    %v2191 = vpop.f32.mrb[0].mxu0
    %v2192 = vadd.f32 %v2103, %v2191
    %v2193 = vpop.f32.mrb[0].mxu0
    %2194 = vmatprep.mubr.f32.mxu0 0.0
    %2195 = vmatmul.mubr.f32.gmra.mrb[0].mxu0 %v1551
    %v2196 = vpop.f32.mrb[0].mxu0
    %v2197 = vadd.f32 %v2103, %v2196
    %v2198 = vpop.f32.mrb[0].mxu0
    %2199 = vmatprep.mubr.f32.mxu0 0.0
    %2200 = vmatmul.mubr.f32.gmra.mrb[0].mxu0 %v1728
    %v2201 = vpop.f32.mrb[0].mxu0
    %v2202 = vadd.f32 %v2103, %v2201
    %v2203 = vpop.f32.mrb[0].mxu0
    %2204 = vmatprep.mubr.f32.mxu0 0.0
    %2205 = vmatmul.mubr.f32.gmra.mrb[0].mxu0 %v1905
    %v2206 = vpop.f32.mrb[0].mxu0
    %v2207 = vadd.f32 %v2103, %v2206
    %v2208 = vpop.f32.mrb[0].mxu0
    %2209 = vmatprep.mubr.f32.mxu0 0.0
    %2210 = vmatmul.mubr.f32.gmra.mrb[0].mxu0 %v2081
    %v2211 = vpop.f32.mrb[0].mxu0
    %v2212 = vadd.f32 %v2103, %v2211
    %v2213 = vpop.f32.mrb[0].mxu0
    %2214 = vmatprep.mubr.f32.mxu0 0.0
    %2215 = vmatmul.mubr.f32.gmra.mrb[0].mxu0 %v2080
    %v2216 = vpop.f32.mrb[0].mxu0
    %v2217 = vadd.f32 %v2103, %v2216
    %v2218 = vpop.f32.mrb[0].mxu0
    %2219 = vdwg.mxu0
    %v2220 = vmax.f32 %v2172, 0.0
    %v2221 = vmax.f32 %v2177, 0.0
    %v2222 = vmax.f32 %v2182, 0.0
    %v2223 = vmax.f32 %v2187, 0.0
    %v2224 = vmax.f32 %v2192, 0.0
    %v2225 = vmax.f32 %v2197, 0.0
    %v2226 = vmax.f32 %v2202, 0.0
    %v2227 = vmax.f32 %v2207, 0.0
    %v2228 = vmax.f32 %v2212, 0.0
    %v2229 = vmax.f32 %v2217, 0.0
    %v2230 = vld [vmem:[#allocation7] sm:$0xff]
    %v2231 = vld [vmem:[#allocation7 + $0x8] sm:$0xff]
    %v2232 = vld [vmem:[#allocation7 + $0x10] sm:$0xff]
    %v2233 = vld [vmem:[#allocation7 + $0x18] sm:$0xff]
    %v2234 = vld [vmem:[#allocation7 + $0x20] sm:$0xff]
    %v2235 = vld [vmem:[#allocation7 + $0x28] sm:$0xff]
    %v2236 = vld [vmem:[#allocation7 + $0x30] sm:$0xff]
    %v2237 = vld [vmem:[#allocation7 + $0x38] sm:$0xff]
    %v2238 = vld [vmem:[#allocation7 + $0x40] sm:$0xff]
    %v2239 = vld [vmem:[#allocation7 + $0x48] sm:$0xff]
    %v2240 = vld [vmem:[#allocation7 + $0x50] sm:$0xff]
    %v2241 = vld [vmem:[#allocation7 + $0x58] sm:$0xff]
    %v2242 = vld [vmem:[#allocation7 + $0x60] sm:$0xff]
    %v2243 = vld [vmem:[#allocation7 + $0x68] sm:$0xff]
    %v2244 = vld [vmem:[#allocation7 + $0x70] sm:$0xff]
    %v2245 = vld [vmem:[#allocation7 + $0x78] sm:$0xff]
    %v2246 = vld [vmem:[%s8] sm:$0x1]
    %v2248 = vlaneseq
    %v2249 = vshrl.u32 %v2248, 7
    %v2250 = vsub.s32 0, %v2249
    %v2251 = vrot.slane %v2246, %v2250
    %2253 = vmatprep.subr.mxu0 0.0
    %2254 = vmatpush1.msra.mxu0 %v2230
    %2255 = vmatprep.subr.mxu0 0.0
    %2256 = vmatpush1.msra.mxu0 %v2231
    %2257 = vmatprep.subr.mxu0 0.0
    %2258 = vmatpush1.msra.mxu0 %v2232
    %2259 = vmatprep.subr.mxu0 0.0
    %2260 = vmatpush1.msra.mxu0 %v2233
    %2261 = vmatprep.subr.mxu0 0.0
    %2262 = vmatpush1.msra.mxu0 %v2234
    %2263 = vmatprep.subr.mxu0 0.0
    %2264 = vmatpush1.msra.mxu0 %v2235
    %2265 = vmatprep.subr.mxu0 0.0
    %2266 = vmatpush1.msra.mxu0 %v2236
    %2267 = vmatprep.subr.mxu0 0.0
    %2268 = vmatpush1.msra.mxu0 %v2237
    %2269 = vmatprep.subr.mxu0 0.0
    %2270 = vmatpush1.msra.mxu0 %v2238
    %2271 = vmatprep.subr.mxu0 0.0
    %2272 = vmatpush1.msra.mxu0 %v2239
    %2273 = vmatprep.subr.mxu0 0.0
    %2274 = vmatpush1.msra.mxu0 %v2240
    %2275 = vmatprep.subr.mxu0 0.0
    %2276 = vmatpush1.msra.mxu0 %v2241
    %2277 = vmatprep.subr.mxu0 0.0
    %2278 = vmatpush1.msra.mxu0 %v2242
    %2279 = vmatprep.subr.mxu0 0.0
    %2280 = vmatpush1.msra.mxu0 %v2243
    %2281 = vmatprep.subr.mxu0 0.0
    %2282 = vmatpush1.msra.mxu0 %v2244
    %2283 = vmatprep.subr.mxu0 0.0
    %2284 = vmatpush1.msra.mxu0 %v2245
    %2285 = vmatprep.subr.mxu0 0.0
    %2286 = vmatpush1.msra.mxu0 0.0
    %2287 = vmatprep.subr.mxu0 0.0
    %2288 = vmatpush1.msra.mxu0 0.0
    %2289 = vmatprep.subr.mxu0 0.0
    %2290 = vmatpush1.msra.mxu0 0.0
    %2291 = vmatprep.subr.mxu0 0.0
    %2292 = vmatpush1.msra.mxu0 0.0
    %2293 = vmatprep.subr.mxu0 0.0
    %2294 = vmatpush1.msra.mxu0 0.0
    %2295 = vmatprep.subr.mxu0 0.0
    %2296 = vmatpush1.msra.mxu0 0.0
    %2297 = vmatprep.subr.mxu0 0.0
    %2298 = vmatpush1.msra.mxu0 0.0
    %2299 = vmatprep.subr.mxu0 0.0
    %2300 = vmatpush1.msra.mxu0 0.0
    %2301 = vmatprep.subr.mxu0 0.0
    %2302 = vmatpush1.msra.mxu0 0.0
    %2303 = vmatprep.subr.mxu0 0.0
    %2304 = vmatpush1.msra.mxu0 0.0
    %2305 = vmatprep.subr.mxu0 0.0
    %2306 = vmatpush1.msra.mxu0 0.0
    %2307 = vmatprep.subr.mxu0 0.0
    %2308 = vmatpush1.msra.mxu0 0.0
    %2309 = vmatprep.subr.mxu0 0.0
    %2310 = vmatpush1.msra.mxu0 0.0
    %2311 = vmatprep.subr.mxu0 0.0
    %2312 = vmatpush1.msra.mxu0 0.0
    %2313 = vmatprep.subr.mxu0 0.0
    %2314 = vmatpush1.msra.mxu0 0.0
    %2315 = vmatprep.subr.mxu0 0.0
    %2316 = vmatpush1.msra.mxu0 0.0
    %2317 = vmatprep.mubr.f32.mxu0 0.0
    %2318 = vmatmul.mubr.f32.gmra.mrb[0].mxu0 %v2220
    %v2319 = vpop.f32.mrb[0].mxu0
    %v2320 = vadd.f32 %v2251, %v2319
    %v2321 = vpop.f32.mrb[0].mxu0
    %2322 = vmatprep.mubr.f32.mxu0 0.0
    %2323 = vmatmul.mubr.f32.gmra.mrb[0].mxu0 %v2221
    %v2324 = vpop.f32.mrb[0].mxu0
    %v2325 = vadd.f32 %v2251, %v2324
    %v2326 = vpop.f32.mrb[0].mxu0
    %2327 = vmatprep.mubr.f32.mxu0 0.0
    %2328 = vmatmul.mubr.f32.gmra.mrb[0].mxu0 %v2222
    %v2329 = vpop.f32.mrb[0].mxu0
    %v2330 = vadd.f32 %v2251, %v2329
    %v2331 = vpop.f32.mrb[0].mxu0
    %2332 = vmatprep.mubr.f32.mxu0 0.0
    %2333 = vmatmul.mubr.f32.gmra.mrb[0].mxu0 %v2223
    %v2334 = vpop.f32.mrb[0].mxu0
    %v2335 = vadd.f32 %v2251, %v2334
    %v2336 = vpop.f32.mrb[0].mxu0
    %2337 = vmatprep.mubr.f32.mxu0 0.0
    %2338 = vmatmul.mubr.f32.gmra.mrb[0].mxu0 %v2224
    %v2339 = vpop.f32.mrb[0].mxu0
    %v2340 = vadd.f32 %v2251, %v2339
    %v2341 = vpop.f32.mrb[0].mxu0
    %2342 = vmatprep.mubr.f32.mxu0 0.0
    %2343 = vmatmul.mubr.f32.gmra.mrb[0].mxu0 %v2225
    %v2344 = vpop.f32.mrb[0].mxu0
    %v2345 = vadd.f32 %v2251, %v2344
    %v2346 = vpop.f32.mrb[0].mxu0
    %2347 = vmatprep.mubr.f32.mxu0 0.0
    %2348 = vmatmul.mubr.f32.gmra.mrb[0].mxu0 %v2226
    %v2349 = vpop.f32.mrb[0].mxu0
    %v2350 = vadd.f32 %v2251, %v2349
    %v2351 = vpop.f32.mrb[0].mxu0
    %2352 = vmatprep.mubr.f32.mxu0 0.0
    %2353 = vmatmul.mubr.f32.gmra.mrb[0].mxu0 %v2227
    %v2354 = vpop.f32.mrb[0].mxu0
    %v2355 = vadd.f32 %v2251, %v2354
    %v2356 = vpop.f32.mrb[0].mxu0
    %2357 = vmatprep.mubr.f32.mxu0 0.0
    %2358 = vmatmul.mubr.f32.gmra.mrb[0].mxu0 %v2228
    %v2359 = vpop.f32.mrb[0].mxu0
    %v2360 = vadd.f32 %v2251, %v2359
    %v2361 = vpop.f32.mrb[0].mxu0
    %2362 = vmatprep.mubr.f32.mxu0 0.0
    %2363 = vmatmul.mubr.f32.gmra.mrb[0].mxu0 %v2229
    %v2364 = vpop.f32.mrb[0].mxu0
    %v2365 = vadd.f32 %v2251, %v2364
    %v2366 = vpop.f32.mrb[0].mxu0
    %2367 = vdwg.mxu0
    %2368 = vst [vmem:[%s9] sm:$0xff] %v2320
    %2369 = vst [vmem:[%s9 + $0x8] sm:$0xff] %v2325
    %2370 = vst [vmem:[%s9 + $0x10] sm:$0xff] %v2330
    %2371 = vst [vmem:[%s9 + $0x18] sm:$0xff] %v2335
    %2372 = vst [vmem:[%s9 + $0x20] sm:$0xff] %v2340
    %2373 = vst [vmem:[%s9 + $0x28] sm:$0xff] %v2345
    %2374 = vst [vmem:[%s9 + $0x30] sm:$0xff] %v2350
    %2375 = vst [vmem:[%s9 + $0x38] sm:$0xff] %v2355
    %2376 = vst [vmem:[%s9 + $0x40] sm:$0xff] %v2360
    %2377 = vst [vmem:[#allocation8] sm:$0xff] %v2365
    // Predicated region
    $region50: #{trajectory_embedder_forward.1} parent=1 // pred_check
      _
    $region51: #{trajectory_embedder_forward.1} parent=1 // pred_check_branch
      %2379 = sbr.rel (0) target = $region53
    $region52: #{trajectory_embedder_forward.1} parent=1 // pred_region
      _
    $region53: #{trajectory_embedder_forward.1} parent=1 // pred_fallthru
      _
    // Predicated region
    $region54: #{trajectory_embedder_forward.1} parent=1 // pred_check
      _
    $region55: #{trajectory_embedder_forward.1} parent=1 // pred_check_branch
      %2381 = sbr.rel (0) target = $region57
    $region56: #{trajectory_embedder_forward.1} parent=1 // pred_region
      %s2383 = ssub.s32 128, 128
      %2384 = vsyncadd [#allocation4], %s2383
      %s2386 = sshll.u32 [#allocation8], 4
      %s2387 = int_to_ptr.vmem [resolvable:$true] %s2386
      %2389 = dma.vmem_to_hbm [thread:$0]  %s2387, 128, %s10, [#allocation4]
    $region57: #{trajectory_embedder_forward.1} parent=1 // pred_fallthru
      _
    // Predicated region
    $region58: #{trajectory_embedder_forward.1} parent=1 // pred_check
      _
    $region59: #{trajectory_embedder_forward.1} parent=1 // pred_check_branch
      %2391 = sbr.rel (0) target = $region61
    $region60: #{trajectory_embedder_forward.1} parent=1 // pred_region
      _
    $region61: #{trajectory_embedder_forward.1} parent=1 // pred_fallthru
      _
    // Predicated region
    $region62: #{trajectory_embedder_forward.1} parent=1 // pred_check
      _
    $region63: #{trajectory_embedder_forward.1} parent=1 // pred_check_branch
      %2393 = sbr.rel (0) target = $region65
    $region64: #{trajectory_embedder_forward.1} parent=1 // pred_region
      %2394 = dma.done [#allocation4], 128
    $region65: #{trajectory_embedder_forward.1} parent=1 // pred_fallthru
      _
    %2395 = vsyncpa [#allocation3], 1
    %2396 = vsyncpa [#allocation6], 1
    %2397 = vsyncpa [#allocation4], 1

</llo_original>
